<compile_context>
chip_gen: v7x
topology: tpu7x:2x2x1
jax: 0.10.0
libtpu: 0.0.40
codegen_flags: <defaults>
</compile_context>

<pallas_src>
import jax
import jax.numpy as jnp
from jax.experimental import pallas as pl
from jax.experimental.pallas import tpu as pltpu

STYLEGAN_SIZE = 256          # -> avg-pool kernel = 256 // 32 = 8
UPSCALE = 7                  # nn.Upsample(scale_factor=7), mode='nearest'
EMBED_DIM = 32               # synthetic CLIP embedding dim
TEXT_DIM = 32                # synthetic CLIP text feature dim
LOGIT_SCALE = 100.0          # synthetic CLIP logit_scale (real CLIP clamps at 100)
_EPS = 1e-12                 # rsqrt eps: diverges from plain-norm division only for
                             # exactly-zero feature vectors (kernel ~0, reference NaN)


def _pool_matrix(in_size, up_factor, kernel):
    """A[i, p] = (1/kernel) * |{u in [i*k, (i+1)*k) : u // up_factor == p}|."""
    up_size = in_size * up_factor
    out_size = (up_size - kernel) // kernel + 1
    u = jnp.arange(out_size * kernel)
    A = jnp.zeros((out_size, in_size), jnp.float32)
    A = A.at[u // kernel, u // up_factor].add(1.0 / kernel)
    return A                                            # [out_size, in_size]


# -------------------- fused kernel: resample + synthetic CLIP head --------------------
def _clip_loss_kernel(img_ref, ah_ref, awt_ref, txt_ref, wi_ref, wt_ref,
                      out_ref, p_scr):
    b = pl.program_id(0)
    nb = pl.num_programs(0)

    # ---- Phase A (every grid step): resample batch element b ------------------------
    # upsample(x7) + avgpool as two lane-dense bf16 MXU matmuls (f32 accumulation); the
    # channel index is folded into the lane axis wrapper-side, so the W-pool of all
    # channels is one matmul against a block-diagonal A_w^T.
    x = img_ref[0]                                                        # [H, C*W] bf16
    t = jnp.dot(ah_ref[...], x,
                preferred_element_type=jnp.float32).astype(jnp.bfloat16)  # [Ho, C*W]
    pooled = jnp.dot(t, awt_ref[...],
                     preferred_element_type=jnp.float32)                  # [Ho, C*Wo] f32
    # single vectorized cast into the persistent bf16 pooled scratch
    p_scr[b] = pooled.astype(jnp.bfloat16)

    # ---- Phase B (once, after the last batch element): batched CLIP head ------------
    @pl.when(b == nb - 1)
    def _():
        feats = p_scr[...]                               # [B, Ho, C*Wo] bf16
        w = wi_ref[...]                                  # [Ho, C*Wo, Ep] bf16
        n_h = feats.shape[1]
        img_feat = jnp.zeros((feats.shape[0], w.shape[2]), jnp.float32)   # [B, Ep]
        # Image encoder: K-chunked contraction over Ho rows, M=B per chunk, f32 accum.
        # TODO(synk): at real StyleGAN-256 / CLIP shapes (Ho=224, E=512) move this onto a
        # second "arbitrary" grid axis with a [B, E] accumulator and bf16 w_img chunks of
        # ~16 Ho rows on v7x (64 MiB VMEM) / ~32-48 rows on v6e/v5e, instead of a static
        # in-kernel loop.
        for h in range(n_h):
            img_feat = img_feat + jnp.dot(feats[:, h, :], w[h],
                                          preferred_element_type=jnp.float32)

        # Text encoder (computed once per call, not once per batch element).
        txt_feat = jnp.dot(txt_ref[...], wt_ref[...],
                           preferred_element_type=jnp.float32)            # [Btp, Ep]

        # L2 normalize (rsqrt -> EUP slot) + cosine logits; logit_scale/100 folded.
        img_n = img_feat * jax.lax.rsqrt(
            jnp.sum(img_feat * img_feat, axis=-1, keepdims=True) + _EPS)
        txt_n = txt_feat * jax.lax.rsqrt(
            jnp.sum(txt_feat * txt_feat, axis=-1, keepdims=True) + _EPS)
        cos = jax.lax.dot_general(img_n, txt_n, (((1,), (1,)), ((), ())),
                                  preferred_element_type=jnp.float32)     # [B, Btp]
        out_ref[...] = 1.0 - (LOGIT_SCALE / 100.0) * cos                  # one dense store


def clip_loss(image, text, w_img, w_txt, stylegan_size=STYLEGAN_SIZE):
    B, C, H, W = image.shape
    k = stylegan_size // 32
    ah = _pool_matrix(H, UPSCALE, k)                     # [Ho, H]
    aw = _pool_matrix(W, UPSCALE, k)                     # [Wo, W]
    Ho, Wo = ah.shape[0], aw.shape[0]
    K2 = C * Wo
    Bt, Td = text.shape
    E = w_txt.shape[1]
    assert w_img.shape == (Ho, K2, E)

    # lane-dense padding for the synthetic head (zero rows/cols are exact no-ops)
    bt_pad = ((Bt + 127) // 128) * 128                   # logits lane dim
    e_pad = ((E + 127) // 128) * 128                     # embedding lane dim

    # wrapper-side layout plumbing (bf16 resample inputs; channel folded into lanes)
    img2d = jnp.transpose(image, (0, 2, 1, 3)).reshape(B, H, C * W).astype(jnp.bfloat16)
    ah_b = ah.astype(jnp.bfloat16)
    # block-diagonal A_w^T in bf16 so the W-pool of all channels is one lane-dense matmul.
    # TODO(synk): at real StyleGAN-256 shapes prefer C per-channel [Ho,W]@[W,Wo] dots to
    # skip the (C-1)/C structural-zero MXU work of the block diagonal.
    awt_blk = jnp.kron(jnp.eye(C, dtype=jnp.float32), aw.T).astype(jnp.bfloat16)
    text_p = jnp.zeros((bt_pad, Td), jnp.float32).at[:Bt].set(text.astype(jnp.float32))
    w_img_p = jnp.pad(w_img.astype(jnp.bfloat16),
                      ((0, 0), (0, 0), (0, e_pad - E)))                   # [Ho, K2, Ep]
    w_txt_p = jnp.pad(w_txt.astype(jnp.float32), ((0, 0), (0, e_pad - E)))  # [Td, Ep]

    const = dict(pipeline_mode=pl.Buffered(1))           # constant-index operands:
                                                         # single pipeline buffer
    out = pl.pallas_call(
        _clip_loss_kernel,
        out_shape=jax.ShapeDtypeStruct((B, bt_pad), jnp.float32),
        grid=(B,),
        in_specs=[
            pl.BlockSpec((1, H, C * W), lambda b: (b, 0, 0)),             # image plane b
            pl.BlockSpec((Ho, H), lambda b: (0, 0), **const),             # A_h (bf16)
            pl.BlockSpec((C * W, K2), lambda b: (0, 0), **const),         # blk-diag A_w^T
            pl.BlockSpec((bt_pad, Td), lambda b: (0, 0), **const),        # padded text
            pl.BlockSpec((Ho, K2, e_pad), lambda b: (0, 0, 0), **const),  # w_img (bf16)
            pl.BlockSpec((Td, e_pad), lambda b: (0, 0), **const),         # w_txt
        ],
        out_specs=pl.BlockSpec((B, bt_pad), lambda b: (0, 0)),            # resident out,
        scratch_shapes=[pltpu.VMEM((B, Ho, K2), jnp.bfloat16)],           # written once
        compiler_params=pltpu.CompilerParams(
            # "arbitrary": scratch + output accumulate across the batch axis (the last
            # step consumes every batch's pooled features), so megacore sharding of this
            # axis would be incorrect — and per-step work is too small to benefit anyway.
            dimension_semantics=("arbitrary",),
            vmem_limit_bytes=32 * 1024 * 1024,
        ),
    )(img2d, ah_b, awt_blk, text_p, w_img_p, w_txt_p)
    return out[:, :Bt]


# ----------------------------- pure-JAX reference ------------------------------------
def _reference(image, text, w_img, w_txt, stylegan_size=STYLEGAN_SIZE):
    B, C, H, W = image.shape
    k = stylegan_size // 32
    ah = _pool_matrix(H, UPSCALE, k)
    aw = _pool_matrix(W, UPSCALE, k)
    Ho, Wo = ah.shape[0], aw.shape[0]
    f32 = jnp.float32
    bf = lambda a: a.astype(jnp.bfloat16).astype(f32)    # mirror kernel bf16 roundings

    t = jnp.einsum('oh,bchw->bcow', bf(ah), bf(image))                    # H-pool (f32)
    pooled = jnp.einsum('bcow,jw->bcoj', bf(t), bf(aw))                   # W-pool (f32)
    feats = bf(pooled).transpose(0, 2, 1, 3).reshape(B, Ho * C * Wo)      # (h, c, w) order
    img_feat = feats @ bf(w_img).reshape(Ho * C * Wo, -1)
    txt_feat = text.astype(f32) @ w_txt.astype(f32)
    img_n = img_feat / jnp.linalg.norm(img_feat, axis=-1, keepdims=True)
    txt_n = txt_feat / jnp.linalg.norm(txt_feat, axis=-1, keepdims=True)
    return 1.0 - LOGIT_SCALE * (img_n @ txt_n.T) / 100.0


if __name__ == "__main__":
    key = jax.random.PRNGKey(0)
    k1, k2, k3, k4 = jax.random.split(key, 4)

    B, C, H, W = 2, 3, 16, 16
    image = jax.random.normal(k1, (B, C, H, W), jnp.float32)
    text = jax.random.normal(k2, (2, TEXT_DIM), jnp.float32)

    k = STYLEGAN_SIZE // 32                              # 8
    Ho = (H * UPSCALE - k) // k + 1                      # 14
    Wo = (W * UPSCALE - k) // k + 1                      # 14

    # deterministic synthetic CLIP parameters; image weight laid out [Ho, C*Wo, E]
    w_img = 0.02 * jax.random.normal(k3, (Ho, C * Wo, EMBED_DIM), jnp.float32)
    w_txt = 0.02 * jax.random.normal(k4, (TEXT_DIM, EMBED_DIM), jnp.float32)

    sim = clip_loss(image, text, w_img, w_txt)
    jax.block_until_ready(sim)
    assert sim.shape == (B, text.shape[0])

    ref = _reference(image, text, w_img, w_txt)
    assert bool(jnp.max(jnp.abs(sim - ref)) < 2e-2)
    print("KERNEL_OK")
</pallas_src>

<mosaic_0001>
module attributes {stable_mosaic.version = 11 : i64} {
  func.func @_clip_loss_kernel(%arg0: i32, %arg1: memref<1x16x48xbf16, #tpu.memory_space<vmem>>, %arg2: memref<14x16xbf16, #tpu.memory_space<vmem>>, %arg3: memref<48x42xbf16, #tpu.memory_space<vmem>>, %arg4: memref<128x32xf32, #tpu.memory_space<vmem>>, %arg5: memref<14x42x128xbf16, #tpu.memory_space<vmem>>, %arg6: memref<32x128xf32, #tpu.memory_space<vmem>>, %arg7: memref<2x128xf32, #tpu.memory_space<vmem>>, %arg8: memref<2x14x42xbf16, #tpu.memory_space<vmem>>) attributes {dimension_semantics = [#tpu.dimension_semantics<arbitrary>], iteration_bounds = array<i64: 2>, scalar_prefetch = 0 : i64, scratch_operands = 1 : i64, tpu.core_type = #tpu.core_type<tc>, window_params = [{transform_indices = @transform_0, window_bounds = array<i64: 1, 16, 48>}, {pipeline_mode = #tpu.pipeline_mode<synchronous>, transform_indices = @transform_1, window_bounds = array<i64: 14, 16>}, {pipeline_mode = #tpu.pipeline_mode<synchronous>, transform_indices = @transform_2, window_bounds = array<i64: 48, 42>}, {pipeline_mode = #tpu.pipeline_mode<synchronous>, transform_indices = @transform_3, window_bounds = array<i64: 128, 32>}, {pipeline_mode = #tpu.pipeline_mode<synchronous>, transform_indices = @transform_4, window_bounds = array<i64: 14, 42, 128>}, {pipeline_mode = #tpu.pipeline_mode<synchronous>, transform_indices = @transform_5, window_bounds = array<i64: 32, 128>}, {pipeline_mode = #tpu.pipeline_mode<synchronous>, transform_indices = @transform_6, window_bounds = array<i64: 2, 128>}]} {
    %c0 = arith.constant 0 : index
    %c0_0 = arith.constant 0 : index
    %c0_1 = arith.constant 0 : index
    %0 = vector.load %arg1[%c0, %c0_0, %c0_1] : memref<1x16x48xbf16, #tpu.memory_space<vmem>>, vector<1x16x48xbf16>
    %1 = vector.shape_cast %0 : vector<1x16x48xbf16> to vector<16x48xbf16>
    %c0_2 = arith.constant 0 : index
    %c0_3 = arith.constant 0 : index
    %2 = vector.load %arg2[%c0_2, %c0_3] : memref<14x16xbf16, #tpu.memory_space<vmem>>, vector<14x16xbf16>
    %cst = arith.constant dense<0.000000e+00> : vector<14x48xf32>
    %3 = tpu.matmul %2, %1, %cst {dimension_numbers = #tpu.dot_dimension_numbers<[1], [0], [0], [1], [0, 0, 1, 1], [], []>} : vector<14x16xbf16>, vector<16x48xbf16>, vector<14x48xf32> -> vector<14x48xf32>
    %4 = arith.truncf %3 : vector<14x48xf32> to vector<14x48xbf16>
    %c0_4 = arith.constant 0 : index
    %c0_5 = arith.constant 0 : index
    %5 = vector.load %arg3[%c0_4, %c0_5] : memref<48x42xbf16, #tpu.memory_space<vmem>>, vector<48x42xbf16>
    %cst_6 = arith.constant dense<0.000000e+00> : vector<14x42xf32>
    %6 = tpu.matmul %4, %5, %cst_6 {dimension_numbers = #tpu.dot_dimension_numbers<[1], [0], [0], [1], [0, 0, 1, 1], [], []>} : vector<14x48xbf16>, vector<48x42xbf16>, vector<14x42xf32> -> vector<14x42xf32>
    %7 = arith.truncf %6 : vector<14x42xf32> to vector<14x42xbf16>
    %8 = arith.index_cast %arg0 : i32 to index
    %c0_7 = arith.constant 0 : index
    %c0_8 = arith.constant 0 : index
    %9 = vector.load %arg8[%8, %c0_7, %c0_8] : memref<2x14x42xbf16, #tpu.memory_space<vmem>>, vector<1x14x42xbf16>
    %10 = vector.shape_cast %9 : vector<1x14x42xbf16> to vector<14x42xbf16>
    %11 = vector.shape_cast %7 : vector<14x42xbf16> to vector<1x14x42xbf16>
    tpu.vector_store %arg8[%8, %c0_7, %c0_8], %11 {strides = array<i32>} : memref<2x14x42xbf16, #tpu.memory_space<vmem>>, vector<1x14x42xbf16>,
    %c1_i32 = arith.constant 1 : i32
    %12 = arith.cmpi eq, %arg0, %c1_i32 : i32
    %13 = arith.extui %12 : i1 to i32
    %c0_i32 = arith.constant 0 : i32
    %14 = arith.cmpi ne, %13, %c0_i32 : i32
    scf.if %14 {
      %c0_9 = arith.constant 0 : index
      %c0_10 = arith.constant 0 : index
      %c0_11 = arith.constant 0 : index
      %15 = vector.load %arg8[%c0_9, %c0_10, %c0_11] : memref<2x14x42xbf16, #tpu.memory_space<vmem>>, vector<2x14x42xbf16>
      %c0_12 = arith.constant 0 : index
      %c0_13 = arith.constant 0 : index
      %c0_14 = arith.constant 0 : index
      %16 = vector.load %arg5[%c0_12, %c0_13, %c0_14] : memref<14x42x128xbf16, #tpu.memory_space<vmem>>, vector<14x42x128xbf16>
      %cst_15 = arith.constant 0.000000e+00 : f32
      %17 = vector.broadcast %cst_15 : f32 to vector<2x128xf32>
      %18 = vector.extract_strided_slice %15 {offsets = [0, 0, 0], sizes = [2, 1, 42], strides = [1, 1, 1]} : vector<2x14x42xbf16> to vector<2x1x42xbf16>
      %19 = vector.shape_cast %18 : vector<2x1x42xbf16> to vector<2x42xbf16>
      %20 = vector.extract_strided_slice %16 {offsets = [0, 0, 0], sizes = [1, 42, 128], strides = [1, 1, 1]} : vector<14x42x128xbf16> to vector<1x42x128xbf16>
      %21 = vector.shape_cast %20 : vector<1x42x128xbf16> to vector<42x128xbf16>
      %cst_16 = arith.constant dense<0.000000e+00> : vector<2x128xf32>
      %22 = tpu.matmul %19, %21, %cst_16 {dimension_numbers = #tpu.dot_dimension_numbers<[1], [0], [0], [1], [0, 0, 1, 1], [], []>} : vector<2x42xbf16>, vector<42x128xbf16>, vector<2x128xf32> -> vector<2x128xf32>
      %23 = arith.addf %17, %22 : vector<2x128xf32>
      %24 = vector.extract_strided_slice %15 {offsets = [0, 1, 0], sizes = [2, 1, 42], strides = [1, 1, 1]} : vector<2x14x42xbf16> to vector<2x1x42xbf16>
      %25 = vector.shape_cast %24 : vector<2x1x42xbf16> to vector<2x42xbf16>
      %26 = vector.extract_strided_slice %16 {offsets = [1, 0, 0], sizes = [1, 42, 128], strides = [1, 1, 1]} : vector<14x42x128xbf16> to vector<1x42x128xbf16>
      %27 = vector.shape_cast %26 : vector<1x42x128xbf16> to vector<42x128xbf16>
      %cst_17 = arith.constant dense<0.000000e+00> : vector<2x128xf32>
      %28 = tpu.matmul %25, %27, %cst_17 {dimension_numbers = #tpu.dot_dimension_numbers<[1], [0], [0], [1], [0, 0, 1, 1], [], []>} : vector<2x42xbf16>, vector<42x128xbf16>, vector<2x128xf32> -> vector<2x128xf32>
      %29 = arith.addf %23, %28 : vector<2x128xf32>
      %30 = vector.extract_strided_slice %15 {offsets = [0, 2, 0], sizes = [2, 1, 42], strides = [1, 1, 1]} : vector<2x14x42xbf16> to vector<2x1x42xbf16>
      %31 = vector.shape_cast %30 : vector<2x1x42xbf16> to vector<2x42xbf16>
      %32 = vector.extract_strided_slice %16 {offsets = [2, 0, 0], sizes = [1, 42, 128], strides = [1, 1, 1]} : vector<14x42x128xbf16> to vector<1x42x128xbf16>
      %33 = vector.shape_cast %32 : vector<1x42x128xbf16> to vector<42x128xbf16>
      %cst_18 = arith.constant dense<0.000000e+00> : vector<2x128xf32>
      %34 = tpu.matmul %31, %33, %cst_18 {dimension_numbers = #tpu.dot_dimension_numbers<[1], [0], [0], [1], [0, 0, 1, 1], [], []>} : vector<2x42xbf16>, vector<42x128xbf16>, vector<2x128xf32> -> vector<2x128xf32>
      %35 = arith.addf %29, %34 : vector<2x128xf32>
      %36 = vector.extract_strided_slice %15 {offsets = [0, 3, 0], sizes = [2, 1, 42], strides = [1, 1, 1]} : vector<2x14x42xbf16> to vector<2x1x42xbf16>
      %37 = vector.shape_cast %36 : vector<2x1x42xbf16> to vector<2x42xbf16>
      %38 = vector.extract_strided_slice %16 {offsets = [3, 0, 0], sizes = [1, 42, 128], strides = [1, 1, 1]} : vector<14x42x128xbf16> to vector<1x42x128xbf16>
      %39 = vector.shape_cast %38 : vector<1x42x128xbf16> to vector<42x128xbf16>
      %cst_19 = arith.constant dense<0.000000e+00> : vector<2x128xf32>
      %40 = tpu.matmul %37, %39, %cst_19 {dimension_numbers = #tpu.dot_dimension_numbers<[1], [0], [0], [1], [0, 0, 1, 1], [], []>} : vector<2x42xbf16>, vector<42x128xbf16>, vector<2x128xf32> -> vector<2x128xf32>
      %41 = arith.addf %35, %40 : vector<2x128xf32>
      %42 = vector.extract_strided_slice %15 {offsets = [0, 4, 0], sizes = [2, 1, 42], strides = [1, 1, 1]} : vector<2x14x42xbf16> to vector<2x1x42xbf16>
      %43 = vector.shape_cast %42 : vector<2x1x42xbf16> to vector<2x42xbf16>
      %44 = vector.extract_strided_slice %16 {offsets = [4, 0, 0], sizes = [1, 42, 128], strides = [1, 1, 1]} : vector<14x42x128xbf16> to vector<1x42x128xbf16>
      %45 = vector.shape_cast %44 : vector<1x42x128xbf16> to vector<42x128xbf16>
      %cst_20 = arith.constant dense<0.000000e+00> : vector<2x128xf32>
      %46 = tpu.matmul %43, %45, %cst_20 {dimension_numbers = #tpu.dot_dimension_numbers<[1], [0], [0], [1], [0, 0, 1, 1], [], []>} : vector<2x42xbf16>, vector<42x128xbf16>, vector<2x128xf32> -> vector<2x128xf32>
      %47 = arith.addf %41, %46 : vector<2x128xf32>
      %48 = vector.extract_strided_slice %15 {offsets = [0, 5, 0], sizes = [2, 1, 42], strides = [1, 1, 1]} : vector<2x14x42xbf16> to vector<2x1x42xbf16>
      %49 = vector.shape_cast %48 : vector<2x1x42xbf16> to vector<2x42xbf16>
      %50 = vector.extract_strided_slice %16 {offsets = [5, 0, 0], sizes = [1, 42, 128], strides = [1, 1, 1]} : vector<14x42x128xbf16> to vector<1x42x128xbf16>
      %51 = vector.shape_cast %50 : vector<1x42x128xbf16> to vector<42x128xbf16>
      %cst_21 = arith.constant dense<0.000000e+00> : vector<2x128xf32>
      %52 = tpu.matmul %49, %51, %cst_21 {dimension_numbers = #tpu.dot_dimension_numbers<[1], [0], [0], [1], [0, 0, 1, 1], [], []>} : vector<2x42xbf16>, vector<42x128xbf16>, vector<2x128xf32> -> vector<2x128xf32>
      %53 = arith.addf %47, %52 : vector<2x128xf32>
      %54 = vector.extract_strided_slice %15 {offsets = [0, 6, 0], sizes = [2, 1, 42], strides = [1, 1, 1]} : vector<2x14x42xbf16> to vector<2x1x42xbf16>
      %55 = vector.shape_cast %54 : vector<2x1x42xbf16> to vector<2x42xbf16>
      %56 = vector.extract_strided_slice %16 {offsets = [6, 0, 0], sizes = [1, 42, 128], strides = [1, 1, 1]} : vector<14x42x128xbf16> to vector<1x42x128xbf16>
      %57 = vector.shape_cast %56 : vector<1x42x128xbf16> to vector<42x128xbf16>
      %cst_22 = arith.constant dense<0.000000e+00> : vector<2x128xf32>
      %58 = tpu.matmul %55, %57, %cst_22 {dimension_numbers = #tpu.dot_dimension_numbers<[1], [0], [0], [1], [0, 0, 1, 1], [], []>} : vector<2x42xbf16>, vector<42x128xbf16>, vector<2x128xf32> -> vector<2x128xf32>
      %59 = arith.addf %53, %58 : vector<2x128xf32>
      %60 = vector.extract_strided_slice %15 {offsets = [0, 7, 0], sizes = [2, 1, 42], strides = [1, 1, 1]} : vector<2x14x42xbf16> to vector<2x1x42xbf16>
      %61 = vector.shape_cast %60 : vector<2x1x42xbf16> to vector<2x42xbf16>
      %62 = vector.extract_strided_slice %16 {offsets = [7, 0, 0], sizes = [1, 42, 128], strides = [1, 1, 1]} : vector<14x42x128xbf16> to vector<1x42x128xbf16>
      %63 = vector.shape_cast %62 : vector<1x42x128xbf16> to vector<42x128xbf16>
      %cst_23 = arith.constant dense<0.000000e+00> : vector<2x128xf32>
      %64 = tpu.matmul %61, %63, %cst_23 {dimension_numbers = #tpu.dot_dimension_numbers<[1], [0], [0], [1], [0, 0, 1, 1], [], []>} : vector<2x42xbf16>, vector<42x128xbf16>, vector<2x128xf32> -> vector<2x128xf32>
      %65 = arith.addf %59, %64 : vector<2x128xf32>
      %66 = vector.extract_strided_slice %15 {offsets = [0, 8, 0], sizes = [2, 1, 42], strides = [1, 1, 1]} : vector<2x14x42xbf16> to vector<2x1x42xbf16>
      %67 = vector.shape_cast %66 : vector<2x1x42xbf16> to vector<2x42xbf16>
      %68 = vector.extract_strided_slice %16 {offsets = [8, 0, 0], sizes = [1, 42, 128], strides = [1, 1, 1]} : vector<14x42x128xbf16> to vector<1x42x128xbf16>
      %69 = vector.shape_cast %68 : vector<1x42x128xbf16> to vector<42x128xbf16>
      %cst_24 = arith.constant dense<0.000000e+00> : vector<2x128xf32>
      %70 = tpu.matmul %67, %69, %cst_24 {dimension_numbers = #tpu.dot_dimension_numbers<[1], [0], [0], [1], [0, 0, 1, 1], [], []>} : vector<2x42xbf16>, vector<42x128xbf16>, vector<2x128xf32> -> vector<2x128xf32>
      %71 = arith.addf %65, %70 : vector<2x128xf32>
      %72 = vector.extract_strided_slice %15 {offsets = [0, 9, 0], sizes = [2, 1, 42], strides = [1, 1, 1]} : vector<2x14x42xbf16> to vector<2x1x42xbf16>
      %73 = vector.shape_cast %72 : vector<2x1x42xbf16> to vector<2x42xbf16>
      %74 = vector.extract_strided_slice %16 {offsets = [9, 0, 0], sizes = [1, 42, 128], strides = [1, 1, 1]} : vector<14x42x128xbf16> to vector<1x42x128xbf16>
      %75 = vector.shape_cast %74 : vector<1x42x128xbf16> to vector<42x128xbf16>
      %cst_25 = arith.constant dense<0.000000e+00> : vector<2x128xf32>
      %76 = tpu.matmul %73, %75, %cst_25 {dimension_numbers = #tpu.dot_dimension_numbers<[1], [0], [0], [1], [0, 0, 1, 1], [], []>} : vector<2x42xbf16>, vector<42x128xbf16>, vector<2x128xf32> -> vector<2x128xf32>
      %77 = arith.addf %71, %76 : vector<2x128xf32>
      %78 = vector.extract_strided_slice %15 {offsets = [0, 10, 0], sizes = [2, 1, 42], strides = [1, 1, 1]} : vector<2x14x42xbf16> to vector<2x1x42xbf16>
      %79 = vector.shape_cast %78 : vector<2x1x42xbf16> to vector<2x42xbf16>
      %80 = vector.extract_strided_slice %16 {offsets = [10, 0, 0], sizes = [1, 42, 128], strides = [1, 1, 1]} : vector<14x42x128xbf16> to vector<1x42x128xbf16>
      %81 = vector.shape_cast %80 : vector<1x42x128xbf16> to vector<42x128xbf16>
      %cst_26 = arith.constant dense<0.000000e+00> : vector<2x128xf32>
      %82 = tpu.matmul %79, %81, %cst_26 {dimension_numbers = #tpu.dot_dimension_numbers<[1], [0], [0], [1], [0, 0, 1, 1], [], []>} : vector<2x42xbf16>, vector<42x128xbf16>, vector<2x128xf32> -> vector<2x128xf32>
      %83 = arith.addf %77, %82 : vector<2x128xf32>
      %84 = vector.extract_strided_slice %15 {offsets = [0, 11, 0], sizes = [2, 1, 42], strides = [1, 1, 1]} : vector<2x14x42xbf16> to vector<2x1x42xbf16>
      %85 = vector.shape_cast %84 : vector<2x1x42xbf16> to vector<2x42xbf16>
      %86 = vector.extract_strided_slice %16 {offsets = [11, 0, 0], sizes = [1, 42, 128], strides = [1, 1, 1]} : vector<14x42x128xbf16> to vector<1x42x128xbf16>
      %87 = vector.shape_cast %86 : vector<1x42x128xbf16> to vector<42x128xbf16>
      %cst_27 = arith.constant dense<0.000000e+00> : vector<2x128xf32>
      %88 = tpu.matmul %85, %87, %cst_27 {dimension_numbers = #tpu.dot_dimension_numbers<[1], [0], [0], [1], [0, 0, 1, 1], [], []>} : vector<2x42xbf16>, vector<42x128xbf16>, vector<2x128xf32> -> vector<2x128xf32>
      %89 = arith.addf %83, %88 : vector<2x128xf32>
      %90 = vector.extract_strided_slice %15 {offsets = [0, 12, 0], sizes = [2, 1, 42], strides = [1, 1, 1]} : vector<2x14x42xbf16> to vector<2x1x42xbf16>
      %91 = vector.shape_cast %90 : vector<2x1x42xbf16> to vector<2x42xbf16>
      %92 = vector.extract_strided_slice %16 {offsets = [12, 0, 0], sizes = [1, 42, 128], strides = [1, 1, 1]} : vector<14x42x128xbf16> to vector<1x42x128xbf16>
      %93 = vector.shape_cast %92 : vector<1x42x128xbf16> to vector<42x128xbf16>
      %cst_28 = arith.constant dense<0.000000e+00> : vector<2x128xf32>
      %94 = tpu.matmul %91, %93, %cst_28 {dimension_numbers = #tpu.dot_dimension_numbers<[1], [0], [0], [1], [0, 0, 1, 1], [], []>} : vector<2x42xbf16>, vector<42x128xbf16>, vector<2x128xf32> -> vector<2x128xf32>
      %95 = arith.addf %89, %94 : vector<2x128xf32>
      %96 = vector.extract_strided_slice %15 {offsets = [0, 13, 0], sizes = [2, 1, 42], strides = [1, 1, 1]} : vector<2x14x42xbf16> to vector<2x1x42xbf16>
      %97 = vector.shape_cast %96 : vector<2x1x42xbf16> to vector<2x42xbf16>
      %98 = vector.extract_strided_slice %16 {offsets = [13, 0, 0], sizes = [1, 42, 128], strides = [1, 1, 1]} : vector<14x42x128xbf16> to vector<1x42x128xbf16>
      %99 = vector.shape_cast %98 : vector<1x42x128xbf16> to vector<42x128xbf16>
      %cst_29 = arith.constant dense<0.000000e+00> : vector<2x128xf32>
      %100 = tpu.matmul %97, %99, %cst_29 {dimension_numbers = #tpu.dot_dimension_numbers<[1], [0], [0], [1], [0, 0, 1, 1], [], []>} : vector<2x42xbf16>, vector<42x128xbf16>, vector<2x128xf32> -> vector<2x128xf32>
      %101 = arith.addf %95, %100 : vector<2x128xf32>
      %c0_30 = arith.constant 0 : index
      %c0_31 = arith.constant 0 : index
      %102 = vector.load %arg4[%c0_30, %c0_31] : memref<128x32xf32, #tpu.memory_space<vmem>>, vector<128x32xf32>
      %c0_32 = arith.constant 0 : index
      %c0_33 = arith.constant 0 : index
      %103 = vector.load %arg6[%c0_32, %c0_33] : memref<32x128xf32, #tpu.memory_space<vmem>>, vector<32x128xf32>
      %cst_34 = arith.constant dense<0.000000e+00> : vector<128x128xf32>
      %104 = tpu.matmul %102, %103, %cst_34 {dimension_numbers = #tpu.dot_dimension_numbers<[1], [0], [0], [1], [0, 0, 1, 1], [], []>} : vector<128x32xf32>, vector<32x128xf32>, vector<128x128xf32> -> vector<128x128xf32>
      %105 = arith.mulf %101, %101 : vector<2x128xf32>
      %cst_35 = arith.constant dense<0.000000e+00> : vector<2xf32>
      %106 = vector.multi_reduction <add>, %105, %cst_35 [1] : vector<2x128xf32> to vector<2xf32>
      %107 = vector.shape_cast %106 : vector<2xf32> to vector<2x1xf32>
      %cst_36 = arith.constant 9.99999996E-13 : f32
      %108 = vector.broadcast %cst_36 : f32 to vector<2x1xf32>
      %109 = arith.addf %107, %108 : vector<2x1xf32>
      %110 = math.rsqrt %109 : vector<2x1xf32>
      %111 = vector.broadcast %110 : vector<2x1xf32> to vector<2x128xf32>
      %112 = arith.mulf %101, %111 : vector<2x128xf32>
      %113 = arith.mulf %104, %104 : vector<128x128xf32>
      %cst_37 = arith.constant dense<0.000000e+00> : vector<128xf32>
      %114 = vector.multi_reduction <add>, %113, %cst_37 [1] : vector<128x128xf32> to vector<128xf32>
      %115 = vector.shape_cast %114 : vector<128xf32> to vector<128x1xf32>
      %cst_38 = arith.constant 9.99999996E-13 : f32
      %116 = vector.broadcast %cst_38 : f32 to vector<128x1xf32>
      %117 = arith.addf %115, %116 : vector<128x1xf32>
      %118 = math.rsqrt %117 : vector<128x1xf32>
      %119 = vector.broadcast %118 : vector<128x1xf32> to vector<128x128xf32>
      %120 = arith.mulf %104, %119 : vector<128x128xf32>
      %cst_39 = arith.constant dense<0.000000e+00> : vector<2x128xf32>
      %121 = tpu.matmul %112, %120, %cst_39 {dimension_numbers = #tpu.dot_dimension_numbers<[1], [1], [0], [0], [0, 0, 1, 0], [], []>} : vector<2x128xf32>, vector<128x128xf32>, vector<2x128xf32> -> vector<2x128xf32>
      %cst_40 = arith.constant 1.000000e+00 : f32
      %122 = vector.broadcast %cst_40 : f32 to vector<2x128xf32>
      %123 = arith.mulf %122, %121 : vector<2x128xf32>
      %cst_41 = arith.constant 1.000000e+00 : f32
      %124 = vector.broadcast %cst_41 : f32 to vector<2x128xf32>
      %125 = arith.subf %124, %123 : vector<2x128xf32>
      %c0_42 = arith.constant 0 : index
      %c0_43 = arith.constant 0 : index
      %126 = vector.load %arg7[%c0_42, %c0_43] : memref<2x128xf32, #tpu.memory_space<vmem>>, vector<2x128xf32>
      tpu.vector_store %arg7[%c0_42, %c0_43], %125 {strides = array<i32>} : memref<2x128xf32, #tpu.memory_space<vmem>>, vector<2x128xf32>,
    } else {
    }
    return
  }
  func.func @transform_0(%arg0: i32) -> (i32, i32, i32) {
    %c0_i32 = arith.constant 0 : i32
    %c0_i32_0 = arith.constant 0 : i32
    %c0_i32_1 = arith.constant 0 : i32
    return %arg0, %c0_i32, %c0_i32_0 : i32, i32, i32
  }
  func.func @transform_1(%arg0: i32) -> (i32, i32) {
    %c0_i32 = arith.constant 0 : i32
    %c0_i32_0 = arith.constant 0 : i32
    %c0_i32_1 = arith.constant 0 : i32
    return %c0_i32, %c0_i32_0 : i32, i32
  }
  func.func @transform_2(%arg0: i32) -> (i32, i32) {
    %c0_i32 = arith.constant 0 : i32
    %c0_i32_0 = arith.constant 0 : i32
    %c0_i32_1 = arith.constant 0 : i32
    return %c0_i32, %c0_i32_0 : i32, i32
  }
  func.func @transform_3(%arg0: i32) -> (i32, i32) {
    %c0_i32 = arith.constant 0 : i32
    %c0_i32_0 = arith.constant 0 : i32
    %c0_i32_1 = arith.constant 0 : i32
    return %c0_i32, %c0_i32_0 : i32, i32
  }
  func.func @transform_4(%arg0: i32) -> (i32, i32, i32) {
    %c0_i32 = arith.constant 0 : i32
    %c0_i32_0 = arith.constant 0 : i32
    %c0_i32_1 = arith.constant 0 : i32
    %c0_i32_2 = arith.constant 0 : i32
    return %c0_i32, %c0_i32_0, %c0_i32_1 : i32, i32, i32
  }
  func.func @transform_5(%arg0: i32) -> (i32, i32) {
    %c0_i32 = arith.constant 0 : i32
    %c0_i32_0 = arith.constant 0 : i32
    %c0_i32_1 = arith.constant 0 : i32
    return %c0_i32, %c0_i32_0 : i32, i32
  }
  func.func @transform_6(%arg0: i32) -> (i32, i32) {
    %c0_i32 = arith.constant 0 : i32
    %c0_i32_0 = arith.constant 0 : i32
    %c0_i32_1 = arith.constant 0 : i32
    return %c0_i32, %c0_i32_0 : i32, i32
  }
}

</mosaic_0001>

<llo_original>
// kernel: tpu_custom_call.1
$region0: #{tpu_custom_call.1}
  #allocation0 [shape = 'u32[]', space=smem, size = 0x4, offset = 0x4, fixed_abs, tag = 'smem constant byte address 0x4 - core index']
  #allocation1 [shape = 'u32[144,128]{1,0:T(1,128)}', space=vmem, size = 0x12000, scoped, tag = 'internal scratch']
  #allocation2 [shape = 'bf16[2,14,42]{2,1,0:T(8,128)(2,1)}', space=vmem, size = 0x2000, scoped, tag = 'scratch operand']
  %s0 = inlined_call_operand.vmem [shape: bf16[2,16,48], index: 0, kind: input, shape index: {}]
  %s1 = inlined_call_operand.vmem [shape: bf16[14,16], index: 1, kind: input, shape index: {}]
  %s2 = inlined_call_operand.vmem [shape: bf16[48,42], index: 2, kind: input, shape index: {}]
  %s3 = inlined_call_operand.vmem [shape: f32[128,32], index: 3, kind: input, shape index: {}]
  %s4 = inlined_call_operand.hbm [shape: bf16[14,42,128], index: 4, kind: input, shape index: {}]
  %s5 = inlined_call_operand.vmem [shape: f32[32,128], index: 5, kind: input, shape index: {}]
  %s6 = inlined_call_operand.hbm [shape: f32[2,128], index: 6, kind: output, shape index: {}]
  %s7 = sld [smem:[#allocation0]]
  $region65: #{tpu_custom_call.1} parent=0
    _
  %s9 = ssub.s32 1, %s7
  %s10 = scalar_select 0, %s9, %s7
  $region1: #{tpu_custom_call.1} parent=0
    #allocation3 [shape = 'u8[172032]{0}', space=vmem, size = 0x2a000, scoped, tag = 'input window, operand 4, single buffered']
    #allocation4 [shape = 's32[2]{0}', space=sflag, size = 0x8, scoped, tag = 'scoped memory for tpu_custom_call.1']
    #allocation5 [shape = 's32[2]{0}', space=sflag, size = 0x8, scoped, tag = 'scoped memory for tpu_custom_call.1']
    #allocation6 [shape = 'u8[1024]{0}', space=vmem, size = 0x400, scoped, tag = 'output window, operand 0, single buffered']
    %11 = vsyncpa [#allocation4], 0
    %12 = vsyncpa [#allocation5], 0
    loop: start=0, step=1, limit=4
    $region2: #{tpu_custom_call.1} parent=1 // loop_pre_header
      _
    $region3: #{tpu_custom_call.1} parent=1 // loop_header
      %s14 = sphi 0, %s18
      %p15 = scmp.ge.s32.totalorder %s14, 4
      %s24 = sphi 0, %s26
      %s27 = sphi 0, %s24
      %s28 = sphi 0, %s27
      %s44 = sphi 0, %s28
      %s48 = sphi 0, %s48
      %s50 = sphi 0, %s48
      %s51 = sphi 0, %s50
      %s65 = sphi 0, %s51
      %s69 = sphi 0, %s69
      %s71 = sphi 0, %s69
      %s72 = sphi 0, %s71
      %s86 = sphi 0, %s72
      %s90 = sphi 0, %s90
      %s92 = sphi 0, %s90
      %s93 = sphi 0, %s92
      %s107 = sphi 0, %s93
      %s111 = sphi 0, %s111
      %s113 = sphi 0, %s111
      %s114 = sphi 0, %s113
      %s128 = sphi 0, %s114
      %s132 = sphi 0, %s132
      %s134 = sphi 0, %s132
      %s135 = sphi 0, %s134
      %s149 = sphi 0, %s135
      %s153 = sphi 0, %s153
      %s155 = sphi 0, %s153
      %s156 = sphi 0, %s155
      %s170 = sphi 0, %s156
    $region4: #{tpu_custom_call.1} parent=1 // loop_header_branch
      %17 = sbr.rel (%p15) target = $region8
    $region5: #{tpu_custom_call.1} parent=1 // loop_body
      %s19 = ssub.s32 %s14, 1
      %s20 = ssub.s32 %s14, 2
      %s21 = sadd.s32 %s14, 1
      %s22 = ssub.s32 %s14, %s21
      %p23 = scmp.eq.s32.totalorder %s22, 0
      %s25 = sadd.s32 %s24, 1
      %s26 = scalar_select %p23, %s24, %s25
      %p29 = pneg %p23
      %p30 = scmp.eq.s32.totalorder %s14, 1
      %p31 = por %p29, %p30
      %p32 = scmp.ne.s32.totalorder %s24, %s27
      %p33 = scmp.eq.s32.totalorder %s14, 0
      %p34 = por %p32, %p33
      %p35 = scmp.ne.s32.totalorder %s24, %s27
      %p36 = scmp.eq.s32.totalorder %s19, 1
      %p37 = por %p35, %p36
      %p38 = scmp.ne.s32.totalorder %s27, %s28
      %p39 = scmp.eq.s32.totalorder %s19, 0
      %p40 = por %p38, %p39
      %p41 = scmp.ne.s32.totalorder %s27, %s28
      %p42 = scmp.eq.s32.totalorder %s20, 1
      %p43 = por %p41, %p42
      %p45 = scmp.ne.s32.totalorder %s28, %s44
      %p46 = scmp.eq.s32.totalorder %s20, 0
      %p47 = por %p45, %p46
      %s49 = sadd.s32 %s48, 1
      %p52 = scmp.eq.s32.totalorder %s14, 1
      %p53 = scmp.ne.s32.totalorder %s48, %s50
      %p54 = scmp.eq.s32.totalorder %s14, 0
      %p55 = por %p53, %p54
      %p56 = scmp.ne.s32.totalorder %s48, %s50
      %p57 = scmp.eq.s32.totalorder %s19, 1
      %p58 = por %p56, %p57
      %p59 = scmp.ne.s32.totalorder %s50, %s51
      %p60 = scmp.eq.s32.totalorder %s19, 0
      %p61 = por %p59, %p60
      %p62 = scmp.ne.s32.totalorder %s50, %s51
      %p63 = scmp.eq.s32.totalorder %s20, 1
      %p64 = por %p62, %p63
      %p66 = scmp.ne.s32.totalorder %s51, %s65
      %p67 = scmp.eq.s32.totalorder %s20, 0
      %p68 = por %p66, %p67
      %s70 = sadd.s32 %s69, 1
      %p73 = scmp.eq.s32.totalorder %s14, 1
      %p74 = scmp.ne.s32.totalorder %s69, %s71
      %p75 = scmp.eq.s32.totalorder %s14, 0
      %p76 = por %p74, %p75
      %p77 = scmp.ne.s32.totalorder %s69, %s71
      %p78 = scmp.eq.s32.totalorder %s19, 1
      %p79 = por %p77, %p78
      %p80 = scmp.ne.s32.totalorder %s71, %s72
      %p81 = scmp.eq.s32.totalorder %s19, 0
      %p82 = por %p80, %p81
      %p83 = scmp.ne.s32.totalorder %s71, %s72
      %p84 = scmp.eq.s32.totalorder %s20, 1
      %p85 = por %p83, %p84
      %p87 = scmp.ne.s32.totalorder %s72, %s86
      %p88 = scmp.eq.s32.totalorder %s20, 0
      %p89 = por %p87, %p88
      %s91 = sadd.s32 %s90, 1
      %p94 = scmp.eq.s32.totalorder %s14, 1
      %p95 = scmp.ne.s32.totalorder %s90, %s92
      %p96 = scmp.eq.s32.totalorder %s14, 0
      %p97 = por %p95, %p96
      %p98 = scmp.ne.s32.totalorder %s90, %s92
      %p99 = scmp.eq.s32.totalorder %s19, 1
      %p100 = por %p98, %p99
      %p101 = scmp.ne.s32.totalorder %s92, %s93
      %p102 = scmp.eq.s32.totalorder %s19, 0
      %p103 = por %p101, %p102
      %p104 = scmp.ne.s32.totalorder %s92, %s93
      %p105 = scmp.eq.s32.totalorder %s20, 1
      %p106 = por %p104, %p105
      %p108 = scmp.ne.s32.totalorder %s93, %s107
      %p109 = scmp.eq.s32.totalorder %s20, 0
      %p110 = por %p108, %p109
      %s112 = sadd.s32 %s111, 1
      %p115 = scmp.eq.s32.totalorder %s14, 1
      %p116 = scmp.ne.s32.totalorder %s111, %s113
      %p117 = scmp.eq.s32.totalorder %s14, 0
      %p118 = por %p116, %p117
      %p119 = scmp.ne.s32.totalorder %s111, %s113
      %p120 = scmp.eq.s32.totalorder %s19, 1
      %p121 = por %p119, %p120
      %p122 = scmp.ne.s32.totalorder %s113, %s114
      %p123 = scmp.eq.s32.totalorder %s19, 0
      %p124 = por %p122, %p123
      %p125 = scmp.ne.s32.totalorder %s113, %s114
      %p126 = scmp.eq.s32.totalorder %s20, 1
      %p127 = por %p125, %p126
      %p129 = scmp.ne.s32.totalorder %s114, %s128
      %p130 = scmp.eq.s32.totalorder %s20, 0
      %p131 = por %p129, %p130
      %s133 = sadd.s32 %s132, 1
      %p136 = scmp.eq.s32.totalorder %s14, 1
      %p137 = scmp.ne.s32.totalorder %s132, %s134
      %p138 = scmp.eq.s32.totalorder %s14, 0
      %p139 = por %p137, %p138
      %p140 = scmp.ne.s32.totalorder %s132, %s134
      %p141 = scmp.eq.s32.totalorder %s19, 1
      %p142 = por %p140, %p141
      %p143 = scmp.ne.s32.totalorder %s134, %s135
      %p144 = scmp.eq.s32.totalorder %s19, 0
      %p145 = por %p143, %p144
      %p146 = scmp.ne.s32.totalorder %s134, %s135
      %p147 = scmp.eq.s32.totalorder %s20, 1
      %p148 = por %p146, %p147
      %p150 = scmp.ne.s32.totalorder %s135, %s149
      %p151 = scmp.eq.s32.totalorder %s20, 0
      %p152 = por %p150, %p151
      %s154 = sadd.s32 %s153, 1
      %p157 = scmp.eq.s32.totalorder %s14, 1
      %p158 = scmp.ne.s32.totalorder %s153, %s155
      %p159 = scmp.eq.s32.totalorder %s14, 0
      %p160 = por %p158, %p159
      %p161 = scmp.ne.s32.totalorder %s153, %s155
      %p162 = scmp.eq.s32.totalorder %s19, 1
      %p163 = por %p161, %p162
      %p164 = scmp.ne.s32.totalorder %s155, %s156
      %p165 = scmp.eq.s32.totalorder %s19, 0
      %p166 = por %p164, %p165
      %p167 = scmp.ne.s32.totalorder %s155, %s156
      %p168 = scmp.eq.s32.totalorder %s20, 1
      %p169 = por %p167, %p168
      %p171 = scmp.ne.s32.totalorder %s156, %s170
      %p172 = scmp.eq.s32.totalorder %s20, 0
      %p173 = por %p171, %p172
      %p174 = scmp.le.s32.totalorder 1, %s14
      %p175 = scmp.lt.s32.totalorder %s14, 3
      %p176 = pnand %p174, %p175
      %p177 = pneg %p176
      // Predicated region
      $region9: #{tpu_custom_call.1} parent=5 // pred_check
        _
      $region10: #{tpu_custom_call.1} parent=5 // pred_check_branch
        %179 = sbr.rel (%p176) target = $region12
      $region11: #{tpu_custom_call.1} parent=5 // pred_region
        %s180 = ssub.s32 %s14, 1
        // Predicated region
        $region13: #{tpu_custom_call.1} parent=11 // pred_check
          %p181 = pneg %p61
        $region14: #{tpu_custom_call.1} parent=11 // pred_check_branch
          %183 = sbr.rel (%p181) target = $region16
        $region15: #{tpu_custom_call.1} parent=11 // pred_region
          _
        $region16: #{tpu_custom_call.1} parent=11 // pred_fallthru
          _
        // Predicated region
        $region17: #{tpu_custom_call.1} parent=11 // pred_check
          %p184 = pneg %p82
        $region18: #{tpu_custom_call.1} parent=11 // pred_check_branch
          %186 = sbr.rel (%p184) target = $region20
        $region19: #{tpu_custom_call.1} parent=11 // pred_region
          _
        $region20: #{tpu_custom_call.1} parent=11 // pred_fallthru
          _
        // Predicated region
        $region21: #{tpu_custom_call.1} parent=11 // pred_check
          %p187 = pneg %p103
        $region22: #{tpu_custom_call.1} parent=11 // pred_check_branch
          %189 = sbr.rel (%p187) target = $region24
        $region23: #{tpu_custom_call.1} parent=11 // pred_region
          _
        $region24: #{tpu_custom_call.1} parent=11 // pred_fallthru
          _
        // Predicated region
        $region25: #{tpu_custom_call.1} parent=11 // pred_check
          %p190 = pneg %p124
        $region26: #{tpu_custom_call.1} parent=11 // pred_check_branch
          %192 = sbr.rel (%p190) target = $region28
        $region27: #{tpu_custom_call.1} parent=11 // pred_region
          %s194 = ssub.s32 5376, 5376
          %195 = vsyncadd [#allocation4], %s194
          %s196 = sshll.u32 [#allocation3], 4
          %s197 = int_to_ptr.vmem [resolvable:$true] %s196
          %202 = dma.hbm_to_vmem [thread:$0]  %s4, 5376, %s197, [#allocation4], 64, 64, 4
        $region28: #{tpu_custom_call.1} parent=11 // pred_fallthru
          _
        // Predicated region
        $region29: #{tpu_custom_call.1} parent=11 // pred_check
          %p203 = pneg %p145
        $region30: #{tpu_custom_call.1} parent=11 // pred_check_branch
          %205 = sbr.rel (%p203) target = $region32
        $region31: #{tpu_custom_call.1} parent=11 // pred_region
          _
        $region32: #{tpu_custom_call.1} parent=11 // pred_fallthru
          _
      $region12: #{tpu_custom_call.1} parent=5 // pred_fallthru
        _
      %p206 = scmp.lt.s32.totalorder %s14, 2
      // Predicated region
      $region33: #{tpu_custom_call.1} parent=5 // pred_check
        %p207 = pneg %p206
      $region34: #{tpu_custom_call.1} parent=5 // pred_check_branch
        %209 = sbr.rel (%p207) target = $region36
      $region35: #{tpu_custom_call.1} parent=5 // pred_region
        // Predicated region
        $region37: #{tpu_custom_call.1} parent=35 // pred_check
          %p210 = pneg %p34
        $region38: #{tpu_custom_call.1} parent=35 // pred_check_branch
          %212 = sbr.rel (%p210) target = $region40
        $region39: #{tpu_custom_call.1} parent=35 // pred_region
          %p213 = scmp.lt.s32.totalorder %s14, 1
          %s214 = scalar_select %p213, %s14, 1
          %s215 = smul.addr %s214, 2
          %s216 = smul.addr %s215, 4
          %s217 = scalar_lea.vmem %s0, %s216
        $region40: #{tpu_custom_call.1} parent=35 // pred_fallthru
          _
      $region36: #{tpu_custom_call.1} parent=5 // pred_fallthru
        _
      %p218 = scmp.le.s32.totalorder 1, %s14
      %p219 = scmp.lt.s32.totalorder %s14, 3
      %p220 = pnand %p218, %p219
      %p221 = pneg %p220
      // Predicated region
      $region41: #{tpu_custom_call.1} parent=5 // pred_check
        _
      $region42: #{tpu_custom_call.1} parent=5 // pred_check_branch
        %223 = sbr.rel (%p220) target = $region44
      $region43: #{tpu_custom_call.1} parent=5 // pred_region
        %s224 = ssub.s32 %s14, 1
        // Predicated region
        $region45: #{tpu_custom_call.1} parent=43 // pred_check
          %p225 = pneg %p124
        $region46: #{tpu_custom_call.1} parent=43 // pred_check_branch
          %227 = sbr.rel (%p225) target = $region48
        $region47: #{tpu_custom_call.1} parent=43 // pred_region
          %228 = dma.done [#allocation4], 5376
        $region48: #{tpu_custom_call.1} parent=43 // pred_fallthru
          _
        %p229 = scmp.lt.s32.totalorder %s19, 1
        %s230 = scalar_select %p229, %s19, 1
        %s231 = smul.addr %s230, 2
        %s232 = smul.addr %s231, 4
        %s233 = scalar_lea.vmem %s0, %s232
        %p234 = pneg %p40
        %p235 = pneg %p37
        %p236 = pneg %p61
        %p237 = pneg %p58
        %p238 = pneg %p82
        %p239 = pneg %p79
        %p240 = pneg %p103
        %p241 = pneg %p100
        %p242 = pneg %p124
        %p243 = pneg %p121
        %p244 = pneg %p145
        %p245 = pneg %p142
        %p246 = pneg %p166
        %p247 = pneg %p163
        %p248 = scmp.lt.s32.totalorder %s19, 1
        %s249 = scalar_select %p248, %s19, 1
        %s250 = smul.addr %s249, 2
        %s251 = smul.addr %s250, 4
        %s252 = scalar_lea.vmem %s0, %s251
        %v254 = vld [vmem:[%s252] sm:$0xf]
        %v255 = vld [vmem:[%s252 + $0x4] sm:$0xf]
        %v256 = vld [vmem:[%s1] sm:$0xf]
        %v257 = vld [vmem:[%s1 + $0x4] sm:$0x7]
        %v260 = vunpack.c.l.b16 %v256
        %v261 = vunpack.c.l.b16 %v257
        %v262 = vpack.c.b16 %v261, %v260
        %v265 = vunpack.c.l.b16 %v254
        %v266 = vunpack.c.l.b16 %v255
        %v267 = vpack.c.b16 %v266, %v265
        %vm269 = vcmask 130048
        %v271 = vsel %vm269, %v262, 0
        %273 = vmatprep.subr.bf16.mxu0 0
        %274 = vmatpush1.bf16.msra.mxu0 %v267
        %275 = vmatprep.subr.bf16.mxu0 0
        %276 = vmatpush1.bf16.msra.mxu0 0
        %277 = vmatprep.subr.bf16.mxu0 0
        %278 = vmatpush1.bf16.msra.mxu0 0
        %279 = vmatprep.subr.bf16.mxu0 0
        %280 = vmatpush1.bf16.msra.mxu0 0
        %281 = vmatprep.subr.bf16.mxu0 0
        %282 = vmatpush1.bf16.msra.mxu0 0
        %283 = vmatprep.subr.bf16.mxu0 0
        %284 = vmatpush1.bf16.msra.mxu0 0
        %285 = vmatprep.subr.bf16.mxu0 0
        %286 = vmatpush1.bf16.msra.mxu0 0
        %287 = vmatprep.subr.bf16.mxu0 0
        %288 = vmatpush1.bf16.msra.mxu0 0
        %289 = vmatprep.subr.bf16.mxu0 0
        %290 = vmatpush1.bf16.msra.mxu0 0
        %291 = vmatprep.subr.bf16.mxu0 0
        %292 = vmatpush1.bf16.msra.mxu0 0
        %293 = vmatprep.subr.bf16.mxu0 0
        %294 = vmatpush1.bf16.msra.mxu0 0
        %295 = vmatprep.subr.bf16.mxu0 0
        %296 = vmatpush1.bf16.msra.mxu0 0
        %297 = vmatprep.subr.bf16.mxu0 0
        %298 = vmatpush1.bf16.msra.mxu0 0
        %299 = vmatprep.subr.bf16.mxu0 0
        %300 = vmatpush1.bf16.msra.mxu0 0
        %301 = vmatprep.subr.bf16.mxu0 0
        %302 = vmatpush1.bf16.msra.mxu0 0
        %303 = vmatprep.subr.bf16.mxu0 0
        %304 = vmatpush1.bf16.msra.mxu0 0
        %305 = vmatprep.mubr.bf16.mxu0 0
        %306 = vmatmul.mubr.bf16.gmra.mrb[0].mxu0 %v271
        %v307 = vpop.f32.mrb[0].mxu0
        %v308 = vadd.f32 0.0, %v307
        %v309 = vpop.f32.mrb[0].mxu0
        %v310 = vpop.f32.mrb[0].mxu0
        %v311 = vadd.f32 0.0, %v310
        %v312 = vpop.f32.mrb[0].mxu0
        %313 = vdwg.mxu0
        %v314 = vpack.c.bf16 %v311, %v308
        %v315 = vld [vmem:[%s2] sm:$0xf]
        %v316 = vld [vmem:[%s2 + $0x4] sm:$0xf]
        %v317 = vld [vmem:[%s2 + $0x8] sm:$0xf]
        %v318 = vld [vmem:[%s2 + $0xc] sm:$0xf]
        %v319 = vld [vmem:[%s2 + $0x10] sm:$0xf]
        %v320 = vld [vmem:[%s2 + $0x14] sm:$0xf]
        %v327 = vunpack.c.l.b16 %v315
        %v328 = vunpack.c.l.b16 %v316
        %v329 = vunpack.c.l.b16 %v317
        %v330 = vunpack.c.l.b16 %v318
        %v331 = vunpack.c.l.b16 %v319
        %v332 = vunpack.c.l.b16 %v320
        %v333 = vpack.c.b16 %v328, %v327
        %v334 = vpack.c.b16 %v330, %v329
        %v335 = vpack.c.b16 %v332, %v331
        %vm339 = vcmask 392192
        %v341 = vsel %vm339, %v314, 0
        %343 = vmatprep.subr.bf16.mxu0 0
        %344 = vmatpush1.bf16.msra.mxu0 %v333
        %345 = vmatprep.subr.bf16.mxu0 0
        %346 = vmatpush1.bf16.msra.mxu0 %v334
        %347 = vmatprep.subr.bf16.mxu0 0
        %348 = vmatpush1.bf16.msra.mxu0 %v335
        %349 = vmatprep.subr.bf16.mxu0 0
        %350 = vmatpush1.bf16.msra.mxu0 0
        %351 = vmatprep.subr.bf16.mxu0 0
        %352 = vmatpush1.bf16.msra.mxu0 0
        %353 = vmatprep.subr.bf16.mxu0 0
        %354 = vmatpush1.bf16.msra.mxu0 0
        %355 = vmatprep.subr.bf16.mxu0 0
        %356 = vmatpush1.bf16.msra.mxu0 0
        %357 = vmatprep.subr.bf16.mxu0 0
        %358 = vmatpush1.bf16.msra.mxu0 0
        %359 = vmatprep.subr.bf16.mxu0 0
        %360 = vmatpush1.bf16.msra.mxu0 0
        %361 = vmatprep.subr.bf16.mxu0 0
        %362 = vmatpush1.bf16.msra.mxu0 0
        %363 = vmatprep.subr.bf16.mxu0 0
        %364 = vmatpush1.bf16.msra.mxu0 0
        %365 = vmatprep.subr.bf16.mxu0 0
        %366 = vmatpush1.bf16.msra.mxu0 0
        %367 = vmatprep.subr.bf16.mxu0 0
        %368 = vmatpush1.bf16.msra.mxu0 0
        %369 = vmatprep.subr.bf16.mxu0 0
        %370 = vmatpush1.bf16.msra.mxu0 0
        %371 = vmatprep.subr.bf16.mxu0 0
        %372 = vmatpush1.bf16.msra.mxu0 0
        %373 = vmatprep.subr.bf16.mxu0 0
        %374 = vmatpush1.bf16.msra.mxu0 0
        %375 = vmatprep.mubr.bf16.mxu0 0
        %376 = vmatmul.mubr.bf16.gmra.mrb[0].mxu0 %v341
        %v377 = vpop.f32.mrb[0].mxu0
        %v378 = vadd.f32 0.0, %v377
        %v379 = vpop.f32.mrb[0].mxu0
        %v380 = vpop.f32.mrb[0].mxu0
        %v381 = vadd.f32 0.0, %v380
        %v382 = vpop.f32.mrb[0].mxu0
        %383 = vdwg.mxu0
        %v384 = vpack.c.bf16 %v381, %v378
        %v386 = vunpack.c.l.b16 %v384
        %v387 = vunpack.c.h.b16 %v384
        %v388 = vpack.c.b16 %v386, %v386
        %v389 = vpack.c.b16 %v387, %v387
        %s392 = smul.u32 %s19, 2
        %s393 = smul.addr %s392, 4
        %s394 = scalar_lea.vmem [#allocation2], %s393
        %vm395 = vcmask 338944
        %396 = vst.msk [vmem:[%s394] sm:$0xf] %vm395, %v388
        %vm397 = vcmask 337920
        %398 = vst.msk [vmem:[%s394 + $0x4] sm:$0x7] %vm397, %v389
        %p399 = scmp.eq.s32.totalorder %s19, 1
        // Predicated region
        $region49: #{tpu_custom_call.1} parent=43 // pred_check
          %p400 = pneg %p399
        $region50: #{tpu_custom_call.1} parent=43 // pred_check_branch
          %402 = sbr.rel (%p400) target = $region52
        $region51: #{tpu_custom_call.1} parent=43 // pred_region
          %v403 = vld [vmem:[#allocation2] sm:$0xf]
          %v404 = vld [vmem:[#allocation2 + $0x4] sm:$0x7]
          %v405 = vld [vmem:[#allocation2 + $0x8] sm:$0xf]
          %v406 = vld [vmem:[#allocation2 + $0xc] sm:$0x7]
          %v407 = vld [vmem:[#allocation3] sm:$0xf]
          %v408 = vld [vmem:[#allocation3 + $0x4] sm:$0xf]
          %v409 = vld [vmem:[#allocation3 + $0x8] sm:$0xf]
          %v410 = vld [vmem:[#allocation3 + $0xc] sm:$0xf]
          %v411 = vld [vmem:[#allocation3 + $0x10] sm:$0xf]
          %v412 = vld [vmem:[#allocation3 + $0x14] sm:$0x1]
          %v413 = vld [vmem:[#allocation3 + $0x18] sm:$0xf]
          %v414 = vld [vmem:[#allocation3 + $0x1c] sm:$0xf]
          %v415 = vld [vmem:[#allocation3 + $0x20] sm:$0xf]
          %v416 = vld [vmem:[#allocation3 + $0x24] sm:$0xf]
          %v417 = vld [vmem:[#allocation3 + $0x28] sm:$0xf]
          %v418 = vld [vmem:[#allocation3 + $0x2c] sm:$0x1]
          %v419 = vld [vmem:[#allocation3 + $0x30] sm:$0xf]
          %v420 = vld [vmem:[#allocation3 + $0x34] sm:$0xf]
          %v421 = vld [vmem:[#allocation3 + $0x38] sm:$0xf]
          %v422 = vld [vmem:[#allocation3 + $0x3c] sm:$0xf]
          %v423 = vld [vmem:[#allocation3 + $0x40] sm:$0xf]
          %v424 = vld [vmem:[#allocation3 + $0x44] sm:$0x1]
          %v425 = vld [vmem:[#allocation3 + $0x48] sm:$0xf]
          %v426 = vld [vmem:[#allocation3 + $0x4c] sm:$0xf]
          %v427 = vld [vmem:[#allocation3 + $0x50] sm:$0xf]
          %v428 = vld [vmem:[#allocation3 + $0x54] sm:$0xf]
          %v429 = vld [vmem:[#allocation3 + $0x58] sm:$0xf]
          %v430 = vld [vmem:[#allocation3 + $0x5c] sm:$0x1]
          %v431 = vld [vmem:[#allocation3 + $0x60] sm:$0xf]
          %v432 = vld [vmem:[#allocation3 + $0x64] sm:$0xf]
          %v433 = vld [vmem:[#allocation3 + $0x68] sm:$0xf]
          %v434 = vld [vmem:[#allocation3 + $0x6c] sm:$0xf]
          %v435 = vld [vmem:[#allocation3 + $0x70] sm:$0xf]
          %v436 = vld [vmem:[#allocation3 + $0x74] sm:$0x1]
          %v437 = vld [vmem:[#allocation3 + $0x78] sm:$0xf]
          %v438 = vld [vmem:[#allocation3 + $0x7c] sm:$0xf]
          %v439 = vld [vmem:[#allocation3 + $0x80] sm:$0xf]
          %v440 = vld [vmem:[#allocation3 + $0x84] sm:$0xf]
          %v441 = vld [vmem:[#allocation3 + $0x88] sm:$0xf]
          %v442 = vld [vmem:[#allocation3 + $0x8c] sm:$0x1]
          %v443 = vld [vmem:[#allocation3 + $0x90] sm:$0xf]
          %v444 = vld [vmem:[#allocation3 + $0x94] sm:$0xf]
          %v445 = vld [vmem:[#allocation3 + $0x98] sm:$0xf]
          %v446 = vld [vmem:[#allocation3 + $0x9c] sm:$0xf]
          %v447 = vld [vmem:[#allocation3 + $0xa0] sm:$0xf]
          %v448 = vld [vmem:[#allocation3 + $0xa4] sm:$0x1]
          %v449 = vld [vmem:[#allocation3 + $0xa8] sm:$0xf]
          %v450 = vld [vmem:[#allocation3 + $0xac] sm:$0xf]
          %v451 = vld [vmem:[#allocation3 + $0xb0] sm:$0xf]
          %v452 = vld [vmem:[#allocation3 + $0xb4] sm:$0xf]
          %v453 = vld [vmem:[#allocation3 + $0xb8] sm:$0xf]
          %v454 = vld [vmem:[#allocation3 + $0xbc] sm:$0x1]
          %v455 = vld [vmem:[#allocation3 + $0xc0] sm:$0xf]
          %v456 = vld [vmem:[#allocation3 + $0xc4] sm:$0xf]
          %v457 = vld [vmem:[#allocation3 + $0xc8] sm:$0xf]
          %v458 = vld [vmem:[#allocation3 + $0xcc] sm:$0xf]
          %v459 = vld [vmem:[#allocation3 + $0xd0] sm:$0xf]
          %v460 = vld [vmem:[#allocation3 + $0xd4] sm:$0x1]
          %v461 = vld [vmem:[#allocation3 + $0xd8] sm:$0xf]
          %v462 = vld [vmem:[#allocation3 + $0xdc] sm:$0xf]
          %v463 = vld [vmem:[#allocation3 + $0xe0] sm:$0xf]
          %v464 = vld [vmem:[#allocation3 + $0xe4] sm:$0xf]
          %v465 = vld [vmem:[#allocation3 + $0xe8] sm:$0xf]
          %v466 = vld [vmem:[#allocation3 + $0xec] sm:$0x1]
          %v467 = vld [vmem:[#allocation3 + $0xf0] sm:$0xf]
          %v468 = vld [vmem:[#allocation3 + $0xf4] sm:$0xf]
          %v469 = vld [vmem:[#allocation3 + $0xf8] sm:$0xf]
          %v470 = vld [vmem:[#allocation3 + $0xfc] sm:$0xf]
          %v471 = vld [vmem:[#allocation3 + $0x100] sm:$0xf]
          %v472 = vld [vmem:[#allocation3 + $0x104] sm:$0x1]
          %v473 = vld [vmem:[#allocation3 + $0x108] sm:$0xf]
          %v474 = vld [vmem:[#allocation3 + $0x10c] sm:$0xf]
          %v475 = vld [vmem:[#allocation3 + $0x110] sm:$0xf]
          %v476 = vld [vmem:[#allocation3 + $0x114] sm:$0xf]
          %v477 = vld [vmem:[#allocation3 + $0x118] sm:$0xf]
          %v478 = vld [vmem:[#allocation3 + $0x11c] sm:$0x1]
          %v479 = vld [vmem:[#allocation3 + $0x120] sm:$0xf]
          %v480 = vld [vmem:[#allocation3 + $0x124] sm:$0xf]
          %v481 = vld [vmem:[#allocation3 + $0x128] sm:$0xf]
          %v482 = vld [vmem:[#allocation3 + $0x12c] sm:$0xf]
          %v483 = vld [vmem:[#allocation3 + $0x130] sm:$0xf]
          %v484 = vld [vmem:[#allocation3 + $0x134] sm:$0x1]
          %v485 = vld [vmem:[#allocation3 + $0x138] sm:$0xf]
          %v486 = vld [vmem:[#allocation3 + $0x13c] sm:$0xf]
          %v487 = vld [vmem:[#allocation3 + $0x140] sm:$0xf]
          %v488 = vld [vmem:[#allocation3 + $0x144] sm:$0xf]
          %v489 = vld [vmem:[#allocation3 + $0x148] sm:$0xf]
          %v490 = vld [vmem:[#allocation3 + $0x14c] sm:$0x1]
          %v493 = vunpack.c.l.b16 %v403
          %v494 = vunpack.c.l.b16 %v405
          %v495 = vpack.c.b16 %v493, %v493
          %v496 = vpack.c.b16 %v494, %v494
          %v497 = vunpack.c.l.b16 %v495
          %v498 = vunpack.c.l.b16 %v496
          %v499 = vrot.slane %v497, 1
          %vm500 = vcmask 1041409
          %v501 = vsel %vm500, %v498, %v499
          %v502 = vpack.c.b16 %v501, %v501
          %v509 = vunpack.c.l.b16 %v413
          %v510 = vunpack.c.l.b16 %v414
          %v511 = vunpack.c.l.b16 %v415
          %v512 = vunpack.c.l.b16 %v416
          %v513 = vunpack.c.l.b16 %v417
          %v514 = vunpack.c.l.b16 %v418
          %v515 = vpack.c.b16 %v510, %v509
          %v516 = vpack.c.b16 %v512, %v511
          %v517 = vpack.c.b16 %v514, %v513
          %vm520 = vcmask 343040
          %v522 = vsel %vm520, %v502, 0
          %vm524 = vcmask 1044480
          %v526 = vsel %vm524, %v517, 0
          %528 = vmatprep.subr.bf16.mxu0 0
          %529 = vmatpush1.bf16.msra.mxu0 %v515
          %530 = vmatprep.subr.bf16.mxu0 0
          %531 = vmatpush1.bf16.msra.mxu0 %v516
          %532 = vmatprep.subr.bf16.mxu0 0
          %533 = vmatpush1.bf16.msra.mxu0 %v526
          %534 = vmatprep.subr.bf16.mxu0 0
          %535 = vmatpush1.bf16.msra.mxu0 0
          %536 = vmatprep.subr.bf16.mxu0 0
          %537 = vmatpush1.bf16.msra.mxu0 0
          %538 = vmatprep.subr.bf16.mxu0 0
          %539 = vmatpush1.bf16.msra.mxu0 0
          %540 = vmatprep.subr.bf16.mxu0 0
          %541 = vmatpush1.bf16.msra.mxu0 0
          %542 = vmatprep.subr.bf16.mxu0 0
          %543 = vmatpush1.bf16.msra.mxu0 0
          %544 = vmatprep.subr.bf16.mxu0 0
          %545 = vmatpush1.bf16.msra.mxu0 0
          %546 = vmatprep.subr.bf16.mxu0 0
          %547 = vmatpush1.bf16.msra.mxu0 0
          %548 = vmatprep.subr.bf16.mxu0 0
          %549 = vmatpush1.bf16.msra.mxu0 0
          %550 = vmatprep.subr.bf16.mxu0 0
          %551 = vmatpush1.bf16.msra.mxu0 0
          %552 = vmatprep.subr.bf16.mxu0 0
          %553 = vmatpush1.bf16.msra.mxu0 0
          %554 = vmatprep.subr.bf16.mxu0 0
          %555 = vmatpush1.bf16.msra.mxu0 0
          %556 = vmatprep.subr.bf16.mxu0 0
          %557 = vmatpush1.bf16.msra.mxu0 0
          %558 = vmatprep.subr.bf16.mxu0 0
          %559 = vmatpush1.bf16.msra.mxu0 0
          %560 = vmatprep.mubr.bf16.mxu0 0
          %561 = vmatmul.mubr.bf16.gmra.mrb[0].mxu0 %v522
          %v562 = vpop.f32.mrb[0].mxu0
          %v563 = vadd.f32 0.0, %v562
          %v564 = vpop.f32.mrb[0].mxu0
          %v565 = vpop.f32.mrb[0].mxu0
          %v566 = vpop.f32.mrb[0].mxu0
          %567 = vdwg.mxu0
          %v568 = vrot.slane %v498, 7
          %v569 = vsel %vm500, %v568, %v497
          %v570 = vpack.c.b16 %v569, %v569
          %v577 = vunpack.c.l.b16 %v407
          %v578 = vunpack.c.l.b16 %v408
          %v579 = vunpack.c.l.b16 %v409
          %v580 = vunpack.c.l.b16 %v410
          %v581 = vunpack.c.l.b16 %v411
          %v582 = vunpack.c.l.b16 %v412
          %v583 = vpack.c.b16 %v578, %v577
          %v584 = vpack.c.b16 %v580, %v579
          %v585 = vpack.c.b16 %v582, %v581
          %v589 = vsel %vm520, %v570, 0
          %v592 = vsel %vm524, %v585, 0
          %594 = vmatprep.subr.bf16.mxu0 0
          %595 = vmatpush1.bf16.msra.mxu0 %v583
          %596 = vmatprep.subr.bf16.mxu0 0
          %597 = vmatpush1.bf16.msra.mxu0 %v584
          %598 = vmatprep.subr.bf16.mxu0 0
          %599 = vmatpush1.bf16.msra.mxu0 %v592
          %600 = vmatprep.subr.bf16.mxu0 0
          %601 = vmatpush1.bf16.msra.mxu0 0
          %602 = vmatprep.subr.bf16.mxu0 0
          %603 = vmatpush1.bf16.msra.mxu0 0
          %604 = vmatprep.subr.bf16.mxu0 0
          %605 = vmatpush1.bf16.msra.mxu0 0
          %606 = vmatprep.subr.bf16.mxu0 0
          %607 = vmatpush1.bf16.msra.mxu0 0
          %608 = vmatprep.subr.bf16.mxu0 0
          %609 = vmatpush1.bf16.msra.mxu0 0
          %610 = vmatprep.subr.bf16.mxu0 0
          %611 = vmatpush1.bf16.msra.mxu0 0
          %612 = vmatprep.subr.bf16.mxu0 0
          %613 = vmatpush1.bf16.msra.mxu0 0
          %614 = vmatprep.subr.bf16.mxu0 0
          %615 = vmatpush1.bf16.msra.mxu0 0
          %616 = vmatprep.subr.bf16.mxu0 0
          %617 = vmatpush1.bf16.msra.mxu0 0
          %618 = vmatprep.subr.bf16.mxu0 0
          %619 = vmatpush1.bf16.msra.mxu0 0
          %620 = vmatprep.subr.bf16.mxu0 0
          %621 = vmatpush1.bf16.msra.mxu0 0
          %622 = vmatprep.subr.bf16.mxu0 0
          %623 = vmatpush1.bf16.msra.mxu0 0
          %624 = vmatprep.subr.bf16.mxu0 0
          %625 = vmatpush1.bf16.msra.mxu0 0
          %626 = vmatprep.mubr.bf16.mxu0 0
          %627 = vmatmul.mubr.bf16.gmra.mrb[0].mxu0 %v589
          %v628 = vpop.f32.mrb[0].mxu0
          %v629 = vadd.f32 %v563, %v628
          %v630 = vpop.f32.mrb[0].mxu0
          %v631 = vpop.f32.mrb[0].mxu0
          %v632 = vpop.f32.mrb[0].mxu0
          %633 = vdwg.mxu0
          %v634 = vrot.slane %v497, 2
          %v635 = vrot.slane %v498, 1
          %v636 = vsel %vm500, %v635, %v634
          %v637 = vpack.c.b16 %v636, %v636
          %v644 = vunpack.c.l.b16 %v419
          %v645 = vunpack.c.l.b16 %v420
          %v646 = vunpack.c.l.b16 %v421
          %v647 = vunpack.c.l.b16 %v422
          %v648 = vunpack.c.l.b16 %v423
          %v649 = vunpack.c.l.b16 %v424
          %v650 = vpack.c.b16 %v645, %v644
          %v651 = vpack.c.b16 %v647, %v646
          %v652 = vpack.c.b16 %v649, %v648
          %v656 = vsel %vm520, %v637, 0
          %v659 = vsel %vm524, %v652, 0
          %661 = vmatprep.subr.bf16.mxu0 0
          %662 = vmatpush1.bf16.msra.mxu0 %v650
          %663 = vmatprep.subr.bf16.mxu0 0
          %664 = vmatpush1.bf16.msra.mxu0 %v651
          %665 = vmatprep.subr.bf16.mxu0 0
          %666 = vmatpush1.bf16.msra.mxu0 %v659
          %667 = vmatprep.subr.bf16.mxu0 0
          %668 = vmatpush1.bf16.msra.mxu0 0
          %669 = vmatprep.subr.bf16.mxu0 0
          %670 = vmatpush1.bf16.msra.mxu0 0
          %671 = vmatprep.subr.bf16.mxu0 0
          %672 = vmatpush1.bf16.msra.mxu0 0
          %673 = vmatprep.subr.bf16.mxu0 0
          %674 = vmatpush1.bf16.msra.mxu0 0
          %675 = vmatprep.subr.bf16.mxu0 0
          %676 = vmatpush1.bf16.msra.mxu0 0
          %677 = vmatprep.subr.bf16.mxu0 0
          %678 = vmatpush1.bf16.msra.mxu0 0
          %679 = vmatprep.subr.bf16.mxu0 0
          %680 = vmatpush1.bf16.msra.mxu0 0
          %681 = vmatprep.subr.bf16.mxu0 0
          %682 = vmatpush1.bf16.msra.mxu0 0
          %683 = vmatprep.subr.bf16.mxu0 0
          %684 = vmatpush1.bf16.msra.mxu0 0
          %685 = vmatprep.subr.bf16.mxu0 0
          %686 = vmatpush1.bf16.msra.mxu0 0
          %687 = vmatprep.subr.bf16.mxu0 0
          %688 = vmatpush1.bf16.msra.mxu0 0
          %689 = vmatprep.subr.bf16.mxu0 0
          %690 = vmatpush1.bf16.msra.mxu0 0
          %691 = vmatprep.subr.bf16.mxu0 0
          %692 = vmatpush1.bf16.msra.mxu0 0
          %693 = vmatprep.mubr.bf16.mxu0 0
          %694 = vmatmul.mubr.bf16.gmra.mrb[0].mxu0 %v656
          %v695 = vpop.f32.mrb[0].mxu0
          %v696 = vadd.f32 0.0, %v695
          %v697 = vpop.f32.mrb[0].mxu0
          %v698 = vpop.f32.mrb[0].mxu0
          %v699 = vpop.f32.mrb[0].mxu0
          %700 = vdwg.mxu0
          %v701 = vadd.f32 %v629, %v696
          %v702 = vrot.slane %v497, 3
          %v703 = vrot.slane %v498, 2
          %v704 = vsel %vm500, %v703, %v702
          %v705 = vpack.c.b16 %v704, %v704
          %v712 = vunpack.c.l.b16 %v425
          %v713 = vunpack.c.l.b16 %v426
          %v714 = vunpack.c.l.b16 %v427
          %v715 = vunpack.c.l.b16 %v428
          %v716 = vunpack.c.l.b16 %v429
          %v717 = vunpack.c.l.b16 %v430
          %v718 = vpack.c.b16 %v713, %v712
          %v719 = vpack.c.b16 %v715, %v714
          %v720 = vpack.c.b16 %v717, %v716
          %v724 = vsel %vm520, %v705, 0
          %v727 = vsel %vm524, %v720, 0
          %729 = vmatprep.subr.bf16.mxu0 0
          %730 = vmatpush1.bf16.msra.mxu0 %v718
          %731 = vmatprep.subr.bf16.mxu0 0
          %732 = vmatpush1.bf16.msra.mxu0 %v719
          %733 = vmatprep.subr.bf16.mxu0 0
          %734 = vmatpush1.bf16.msra.mxu0 %v727
          %735 = vmatprep.subr.bf16.mxu0 0
          %736 = vmatpush1.bf16.msra.mxu0 0
          %737 = vmatprep.subr.bf16.mxu0 0
          %738 = vmatpush1.bf16.msra.mxu0 0
          %739 = vmatprep.subr.bf16.mxu0 0
          %740 = vmatpush1.bf16.msra.mxu0 0
          %741 = vmatprep.subr.bf16.mxu0 0
          %742 = vmatpush1.bf16.msra.mxu0 0
          %743 = vmatprep.subr.bf16.mxu0 0
          %744 = vmatpush1.bf16.msra.mxu0 0
          %745 = vmatprep.subr.bf16.mxu0 0
          %746 = vmatpush1.bf16.msra.mxu0 0
          %747 = vmatprep.subr.bf16.mxu0 0
          %748 = vmatpush1.bf16.msra.mxu0 0
          %749 = vmatprep.subr.bf16.mxu0 0
          %750 = vmatpush1.bf16.msra.mxu0 0
          %751 = vmatprep.subr.bf16.mxu0 0
          %752 = vmatpush1.bf16.msra.mxu0 0
          %753 = vmatprep.subr.bf16.mxu0 0
          %754 = vmatpush1.bf16.msra.mxu0 0
          %755 = vmatprep.subr.bf16.mxu0 0
          %756 = vmatpush1.bf16.msra.mxu0 0
          %757 = vmatprep.subr.bf16.mxu0 0
          %758 = vmatpush1.bf16.msra.mxu0 0
          %759 = vmatprep.subr.bf16.mxu0 0
          %760 = vmatpush1.bf16.msra.mxu0 0
          %761 = vmatprep.mubr.bf16.mxu0 0
          %762 = vmatmul.mubr.bf16.gmra.mrb[0].mxu0 %v724
          %v763 = vpop.f32.mrb[0].mxu0
          %v764 = vadd.f32 0.0, %v763
          %v765 = vpop.f32.mrb[0].mxu0
          %v766 = vpop.f32.mrb[0].mxu0
          %v767 = vpop.f32.mrb[0].mxu0
          %768 = vdwg.mxu0
          %v769 = vadd.f32 %v701, %v764
          %v770 = vrot.slane %v497, 4
          %v771 = vrot.slane %v498, 3
          %v772 = vsel %vm500, %v771, %v770
          %v773 = vpack.c.b16 %v772, %v772
          %v780 = vunpack.c.l.b16 %v431
          %v781 = vunpack.c.l.b16 %v432
          %v782 = vunpack.c.l.b16 %v433
          %v783 = vunpack.c.l.b16 %v434
          %v784 = vunpack.c.l.b16 %v435
          %v785 = vunpack.c.l.b16 %v436
          %v786 = vpack.c.b16 %v781, %v780
          %v787 = vpack.c.b16 %v783, %v782
          %v788 = vpack.c.b16 %v785, %v784
          %v792 = vsel %vm520, %v773, 0
          %v795 = vsel %vm524, %v788, 0
          %797 = vmatprep.subr.bf16.mxu0 0
          %798 = vmatpush1.bf16.msra.mxu0 %v786
          %799 = vmatprep.subr.bf16.mxu0 0
          %800 = vmatpush1.bf16.msra.mxu0 %v787
          %801 = vmatprep.subr.bf16.mxu0 0
          %802 = vmatpush1.bf16.msra.mxu0 %v795
          %803 = vmatprep.subr.bf16.mxu0 0
          %804 = vmatpush1.bf16.msra.mxu0 0
          %805 = vmatprep.subr.bf16.mxu0 0
          %806 = vmatpush1.bf16.msra.mxu0 0
          %807 = vmatprep.subr.bf16.mxu0 0
          %808 = vmatpush1.bf16.msra.mxu0 0
          %809 = vmatprep.subr.bf16.mxu0 0
          %810 = vmatpush1.bf16.msra.mxu0 0
          %811 = vmatprep.subr.bf16.mxu0 0
          %812 = vmatpush1.bf16.msra.mxu0 0
          %813 = vmatprep.subr.bf16.mxu0 0
          %814 = vmatpush1.bf16.msra.mxu0 0
          %815 = vmatprep.subr.bf16.mxu0 0
          %816 = vmatpush1.bf16.msra.mxu0 0
          %817 = vmatprep.subr.bf16.mxu0 0
          %818 = vmatpush1.bf16.msra.mxu0 0
          %819 = vmatprep.subr.bf16.mxu0 0
          %820 = vmatpush1.bf16.msra.mxu0 0
          %821 = vmatprep.subr.bf16.mxu0 0
          %822 = vmatpush1.bf16.msra.mxu0 0
          %823 = vmatprep.subr.bf16.mxu0 0
          %824 = vmatpush1.bf16.msra.mxu0 0
          %825 = vmatprep.subr.bf16.mxu0 0
          %826 = vmatpush1.bf16.msra.mxu0 0
          %827 = vmatprep.subr.bf16.mxu0 0
          %828 = vmatpush1.bf16.msra.mxu0 0
          %829 = vmatprep.mubr.bf16.mxu0 0
          %830 = vmatmul.mubr.bf16.gmra.mrb[0].mxu0 %v792
          %v831 = vpop.f32.mrb[0].mxu0
          %v832 = vadd.f32 0.0, %v831
          %v833 = vpop.f32.mrb[0].mxu0
          %v834 = vpop.f32.mrb[0].mxu0
          %v835 = vpop.f32.mrb[0].mxu0
          %836 = vdwg.mxu0
          %v837 = vadd.f32 %v769, %v832
          %v838 = vrot.slane %v497, 5
          %v839 = vrot.slane %v498, 4
          %v840 = vsel %vm500, %v839, %v838
          %v841 = vpack.c.b16 %v840, %v840
          %v848 = vunpack.c.l.b16 %v437
          %v849 = vunpack.c.l.b16 %v438
          %v850 = vunpack.c.l.b16 %v439
          %v851 = vunpack.c.l.b16 %v440
          %v852 = vunpack.c.l.b16 %v441
          %v853 = vunpack.c.l.b16 %v442
          %v854 = vpack.c.b16 %v849, %v848
          %v855 = vpack.c.b16 %v851, %v850
          %v856 = vpack.c.b16 %v853, %v852
          %v860 = vsel %vm520, %v841, 0
          %v863 = vsel %vm524, %v856, 0
          %865 = vmatprep.subr.bf16.mxu0 0
          %866 = vmatpush1.bf16.msra.mxu0 %v854
          %867 = vmatprep.subr.bf16.mxu0 0
          %868 = vmatpush1.bf16.msra.mxu0 %v855
          %869 = vmatprep.subr.bf16.mxu0 0
          %870 = vmatpush1.bf16.msra.mxu0 %v863
          %871 = vmatprep.subr.bf16.mxu0 0
          %872 = vmatpush1.bf16.msra.mxu0 0
          %873 = vmatprep.subr.bf16.mxu0 0
          %874 = vmatpush1.bf16.msra.mxu0 0
          %875 = vmatprep.subr.bf16.mxu0 0
          %876 = vmatpush1.bf16.msra.mxu0 0
          %877 = vmatprep.subr.bf16.mxu0 0
          %878 = vmatpush1.bf16.msra.mxu0 0
          %879 = vmatprep.subr.bf16.mxu0 0
          %880 = vmatpush1.bf16.msra.mxu0 0
          %881 = vmatprep.subr.bf16.mxu0 0
          %882 = vmatpush1.bf16.msra.mxu0 0
          %883 = vmatprep.subr.bf16.mxu0 0
          %884 = vmatpush1.bf16.msra.mxu0 0
          %885 = vmatprep.subr.bf16.mxu0 0
          %886 = vmatpush1.bf16.msra.mxu0 0
          %887 = vmatprep.subr.bf16.mxu0 0
          %888 = vmatpush1.bf16.msra.mxu0 0
          %889 = vmatprep.subr.bf16.mxu0 0
          %890 = vmatpush1.bf16.msra.mxu0 0
          %891 = vmatprep.subr.bf16.mxu0 0
          %892 = vmatpush1.bf16.msra.mxu0 0
          %893 = vmatprep.subr.bf16.mxu0 0
          %894 = vmatpush1.bf16.msra.mxu0 0
          %895 = vmatprep.subr.bf16.mxu0 0
          %896 = vmatpush1.bf16.msra.mxu0 0
          %897 = vmatprep.mubr.bf16.mxu0 0
          %898 = vmatmul.mubr.bf16.gmra.mrb[0].mxu0 %v860
          %v899 = vpop.f32.mrb[0].mxu0
          %v900 = vadd.f32 0.0, %v899
          %v901 = vpop.f32.mrb[0].mxu0
          %v902 = vpop.f32.mrb[0].mxu0
          %v903 = vpop.f32.mrb[0].mxu0
          %904 = vdwg.mxu0
          %v905 = vadd.f32 %v837, %v900
          %v906 = vrot.slane %v497, 6
          %v907 = vrot.slane %v498, 5
          %v908 = vsel %vm500, %v907, %v906
          %v909 = vpack.c.b16 %v908, %v908
          %v916 = vunpack.c.l.b16 %v443
          %v917 = vunpack.c.l.b16 %v444
          %v918 = vunpack.c.l.b16 %v445
          %v919 = vunpack.c.l.b16 %v446
          %v920 = vunpack.c.l.b16 %v447
          %v921 = vunpack.c.l.b16 %v448
          %v922 = vpack.c.b16 %v917, %v916
          %v923 = vpack.c.b16 %v919, %v918
          %v924 = vpack.c.b16 %v921, %v920
          %v928 = vsel %vm520, %v909, 0
          %v931 = vsel %vm524, %v924, 0
          %933 = vmatprep.subr.bf16.mxu0 0
          %934 = vmatpush1.bf16.msra.mxu0 %v922
          %935 = vmatprep.subr.bf16.mxu0 0
          %936 = vmatpush1.bf16.msra.mxu0 %v923
          %937 = vmatprep.subr.bf16.mxu0 0
          %938 = vmatpush1.bf16.msra.mxu0 %v931
          %939 = vmatprep.subr.bf16.mxu0 0
          %940 = vmatpush1.bf16.msra.mxu0 0
          %941 = vmatprep.subr.bf16.mxu0 0
          %942 = vmatpush1.bf16.msra.mxu0 0
          %943 = vmatprep.subr.bf16.mxu0 0
          %944 = vmatpush1.bf16.msra.mxu0 0
          %945 = vmatprep.subr.bf16.mxu0 0
          %946 = vmatpush1.bf16.msra.mxu0 0
          %947 = vmatprep.subr.bf16.mxu0 0
          %948 = vmatpush1.bf16.msra.mxu0 0
          %949 = vmatprep.subr.bf16.mxu0 0
          %950 = vmatpush1.bf16.msra.mxu0 0
          %951 = vmatprep.subr.bf16.mxu0 0
          %952 = vmatpush1.bf16.msra.mxu0 0
          %953 = vmatprep.subr.bf16.mxu0 0
          %954 = vmatpush1.bf16.msra.mxu0 0
          %955 = vmatprep.subr.bf16.mxu0 0
          %956 = vmatpush1.bf16.msra.mxu0 0
          %957 = vmatprep.subr.bf16.mxu0 0
          %958 = vmatpush1.bf16.msra.mxu0 0
          %959 = vmatprep.subr.bf16.mxu0 0
          %960 = vmatpush1.bf16.msra.mxu0 0
          %961 = vmatprep.subr.bf16.mxu0 0
          %962 = vmatpush1.bf16.msra.mxu0 0
          %963 = vmatprep.subr.bf16.mxu0 0
          %964 = vmatpush1.bf16.msra.mxu0 0
          %965 = vmatprep.mubr.bf16.mxu0 0
          %966 = vmatmul.mubr.bf16.gmra.mrb[0].mxu0 %v928
          %v967 = vpop.f32.mrb[0].mxu0
          %v968 = vadd.f32 0.0, %v967
          %v969 = vpop.f32.mrb[0].mxu0
          %v970 = vpop.f32.mrb[0].mxu0
          %v971 = vpop.f32.mrb[0].mxu0
          %972 = vdwg.mxu0
          %v973 = vadd.f32 %v905, %v968
          %v974 = vrot.slane %v497, 7
          %v975 = vrot.slane %v498, 6
          %v976 = vsel %vm500, %v975, %v974
          %v977 = vpack.c.b16 %v976, %v976
          %v984 = vunpack.c.l.b16 %v449
          %v985 = vunpack.c.l.b16 %v450
          %v986 = vunpack.c.l.b16 %v451
          %v987 = vunpack.c.l.b16 %v452
          %v988 = vunpack.c.l.b16 %v453
          %v989 = vunpack.c.l.b16 %v454
          %v990 = vpack.c.b16 %v985, %v984
          %v991 = vpack.c.b16 %v987, %v986
          %v992 = vpack.c.b16 %v989, %v988
          %v996 = vsel %vm520, %v977, 0
          %v999 = vsel %vm524, %v992, 0
          %1001 = vmatprep.subr.bf16.mxu0 0
          %1002 = vmatpush1.bf16.msra.mxu0 %v990
          %1003 = vmatprep.subr.bf16.mxu0 0
          %1004 = vmatpush1.bf16.msra.mxu0 %v991
          %1005 = vmatprep.subr.bf16.mxu0 0
          %1006 = vmatpush1.bf16.msra.mxu0 %v999
          %1007 = vmatprep.subr.bf16.mxu0 0
          %1008 = vmatpush1.bf16.msra.mxu0 0
          %1009 = vmatprep.subr.bf16.mxu0 0
          %1010 = vmatpush1.bf16.msra.mxu0 0
          %1011 = vmatprep.subr.bf16.mxu0 0
          %1012 = vmatpush1.bf16.msra.mxu0 0
          %1013 = vmatprep.subr.bf16.mxu0 0
          %1014 = vmatpush1.bf16.msra.mxu0 0
          %1015 = vmatprep.subr.bf16.mxu0 0
          %1016 = vmatpush1.bf16.msra.mxu0 0
          %1017 = vmatprep.subr.bf16.mxu0 0
          %1018 = vmatpush1.bf16.msra.mxu0 0
          %1019 = vmatprep.subr.bf16.mxu0 0
          %1020 = vmatpush1.bf16.msra.mxu0 0
          %1021 = vmatprep.subr.bf16.mxu0 0
          %1022 = vmatpush1.bf16.msra.mxu0 0
          %1023 = vmatprep.subr.bf16.mxu0 0
          %1024 = vmatpush1.bf16.msra.mxu0 0
          %1025 = vmatprep.subr.bf16.mxu0 0
          %1026 = vmatpush1.bf16.msra.mxu0 0
          %1027 = vmatprep.subr.bf16.mxu0 0
          %1028 = vmatpush1.bf16.msra.mxu0 0
          %1029 = vmatprep.subr.bf16.mxu0 0
          %1030 = vmatpush1.bf16.msra.mxu0 0
          %1031 = vmatprep.subr.bf16.mxu0 0
          %1032 = vmatpush1.bf16.msra.mxu0 0
          %1033 = vmatprep.mubr.bf16.mxu0 0
          %1034 = vmatmul.mubr.bf16.gmra.mrb[0].mxu0 %v996
          %v1035 = vpop.f32.mrb[0].mxu0
          %v1036 = vadd.f32 0.0, %v1035
          %v1037 = vpop.f32.mrb[0].mxu0
          %v1038 = vpop.f32.mrb[0].mxu0
          %v1039 = vpop.f32.mrb[0].mxu0
          %1040 = vdwg.mxu0
          %v1041 = vadd.f32 %v973, %v1036
          %v1044 = vunpack.c.l.b16 %v404
          %v1045 = vunpack.c.l.b16 %v406
          %v1046 = vpack.c.b16 %v1044, %v1044
          %v1047 = vpack.c.b16 %v1045, %v1045
          %v1048 = vunpack.c.l.b16 %v1046
          %v1049 = vunpack.c.l.b16 %v1047
          %v1050 = vrot.slane %v1049, 7
          %v1051 = vsel %vm500, %v1050, %v1048
          %v1052 = vpack.c.b16 %v1051, %v1051
          %v1059 = vunpack.c.l.b16 %v455
          %v1060 = vunpack.c.l.b16 %v456
          %v1061 = vunpack.c.l.b16 %v457
          %v1062 = vunpack.c.l.b16 %v458
          %v1063 = vunpack.c.l.b16 %v459
          %v1064 = vunpack.c.l.b16 %v460
          %v1065 = vpack.c.b16 %v1060, %v1059
          %v1066 = vpack.c.b16 %v1062, %v1061
          %v1067 = vpack.c.b16 %v1064, %v1063
          %v1071 = vsel %vm520, %v1052, 0
          %v1074 = vsel %vm524, %v1067, 0
          %1076 = vmatprep.subr.bf16.mxu0 0
          %1077 = vmatpush1.bf16.msra.mxu0 %v1065
          %1078 = vmatprep.subr.bf16.mxu0 0
          %1079 = vmatpush1.bf16.msra.mxu0 %v1066
          %1080 = vmatprep.subr.bf16.mxu0 0
          %1081 = vmatpush1.bf16.msra.mxu0 %v1074
          %1082 = vmatprep.subr.bf16.mxu0 0
          %1083 = vmatpush1.bf16.msra.mxu0 0
          %1084 = vmatprep.subr.bf16.mxu0 0
          %1085 = vmatpush1.bf16.msra.mxu0 0
          %1086 = vmatprep.subr.bf16.mxu0 0
          %1087 = vmatpush1.bf16.msra.mxu0 0
          %1088 = vmatprep.subr.bf16.mxu0 0
          %1089 = vmatpush1.bf16.msra.mxu0 0
          %1090 = vmatprep.subr.bf16.mxu0 0
          %1091 = vmatpush1.bf16.msra.mxu0 0
          %1092 = vmatprep.subr.bf16.mxu0 0
          %1093 = vmatpush1.bf16.msra.mxu0 0
          %1094 = vmatprep.subr.bf16.mxu0 0
          %1095 = vmatpush1.bf16.msra.mxu0 0
          %1096 = vmatprep.subr.bf16.mxu0 0
          %1097 = vmatpush1.bf16.msra.mxu0 0
          %1098 = vmatprep.subr.bf16.mxu0 0
          %1099 = vmatpush1.bf16.msra.mxu0 0
          %1100 = vmatprep.subr.bf16.mxu0 0
          %1101 = vmatpush1.bf16.msra.mxu0 0
          %1102 = vmatprep.subr.bf16.mxu0 0
          %1103 = vmatpush1.bf16.msra.mxu0 0
          %1104 = vmatprep.subr.bf16.mxu0 0
          %1105 = vmatpush1.bf16.msra.mxu0 0
          %1106 = vmatprep.subr.bf16.mxu0 0
          %1107 = vmatpush1.bf16.msra.mxu0 0
          %1108 = vmatprep.mubr.bf16.mxu0 0
          %1109 = vmatmul.mubr.bf16.gmra.mrb[0].mxu0 %v1071
          %v1110 = vpop.f32.mrb[0].mxu0
          %v1111 = vadd.f32 0.0, %v1110
          %v1112 = vpop.f32.mrb[0].mxu0
          %v1113 = vpop.f32.mrb[0].mxu0
          %v1114 = vpop.f32.mrb[0].mxu0
          %1115 = vdwg.mxu0
          %v1116 = vadd.f32 %v1041, %v1111
          %v1117 = vrot.slane %v1048, 1
          %v1118 = vsel %vm500, %v1049, %v1117
          %v1119 = vpack.c.b16 %v1118, %v1118
          %v1126 = vunpack.c.l.b16 %v461
          %v1127 = vunpack.c.l.b16 %v462
          %v1128 = vunpack.c.l.b16 %v463
          %v1129 = vunpack.c.l.b16 %v464
          %v1130 = vunpack.c.l.b16 %v465
          %v1131 = vunpack.c.l.b16 %v466
          %v1132 = vpack.c.b16 %v1127, %v1126
          %v1133 = vpack.c.b16 %v1129, %v1128
          %v1134 = vpack.c.b16 %v1131, %v1130
          %v1138 = vsel %vm520, %v1119, 0
          %v1141 = vsel %vm524, %v1134, 0
          %1143 = vmatprep.subr.bf16.mxu0 0
          %1144 = vmatpush1.bf16.msra.mxu0 %v1132
          %1145 = vmatprep.subr.bf16.mxu0 0
          %1146 = vmatpush1.bf16.msra.mxu0 %v1133
          %1147 = vmatprep.subr.bf16.mxu0 0
          %1148 = vmatpush1.bf16.msra.mxu0 %v1141
          %1149 = vmatprep.subr.bf16.mxu0 0
          %1150 = vmatpush1.bf16.msra.mxu0 0
          %1151 = vmatprep.subr.bf16.mxu0 0
          %1152 = vmatpush1.bf16.msra.mxu0 0
          %1153 = vmatprep.subr.bf16.mxu0 0
          %1154 = vmatpush1.bf16.msra.mxu0 0
          %1155 = vmatprep.subr.bf16.mxu0 0
          %1156 = vmatpush1.bf16.msra.mxu0 0
          %1157 = vmatprep.subr.bf16.mxu0 0
          %1158 = vmatpush1.bf16.msra.mxu0 0
          %1159 = vmatprep.subr.bf16.mxu0 0
          %1160 = vmatpush1.bf16.msra.mxu0 0
          %1161 = vmatprep.subr.bf16.mxu0 0
          %1162 = vmatpush1.bf16.msra.mxu0 0
          %1163 = vmatprep.subr.bf16.mxu0 0
          %1164 = vmatpush1.bf16.msra.mxu0 0
          %1165 = vmatprep.subr.bf16.mxu0 0
          %1166 = vmatpush1.bf16.msra.mxu0 0
          %1167 = vmatprep.subr.bf16.mxu0 0
          %1168 = vmatpush1.bf16.msra.mxu0 0
          %1169 = vmatprep.subr.bf16.mxu0 0
          %1170 = vmatpush1.bf16.msra.mxu0 0
          %1171 = vmatprep.subr.bf16.mxu0 0
          %1172 = vmatpush1.bf16.msra.mxu0 0
          %1173 = vmatprep.subr.bf16.mxu0 0
          %1174 = vmatpush1.bf16.msra.mxu0 0
          %1175 = vmatprep.mubr.bf16.mxu0 0
          %1176 = vmatmul.mubr.bf16.gmra.mrb[0].mxu0 %v1138
          %v1177 = vpop.f32.mrb[0].mxu0
          %v1178 = vadd.f32 0.0, %v1177
          %v1179 = vpop.f32.mrb[0].mxu0
          %v1180 = vpop.f32.mrb[0].mxu0
          %v1181 = vpop.f32.mrb[0].mxu0
          %1182 = vdwg.mxu0
          %v1183 = vadd.f32 %v1116, %v1178
          %v1184 = vrot.slane %v1048, 2
          %v1185 = vrot.slane %v1049, 1
          %v1186 = vsel %vm500, %v1185, %v1184
          %v1187 = vpack.c.b16 %v1186, %v1186
          %v1194 = vunpack.c.l.b16 %v467
          %v1195 = vunpack.c.l.b16 %v468
          %v1196 = vunpack.c.l.b16 %v469
          %v1197 = vunpack.c.l.b16 %v470
          %v1198 = vunpack.c.l.b16 %v471
          %v1199 = vunpack.c.l.b16 %v472
          %v1200 = vpack.c.b16 %v1195, %v1194
          %v1201 = vpack.c.b16 %v1197, %v1196
          %v1202 = vpack.c.b16 %v1199, %v1198
          %v1206 = vsel %vm520, %v1187, 0
          %v1209 = vsel %vm524, %v1202, 0
          %1211 = vmatprep.subr.bf16.mxu0 0
          %1212 = vmatpush1.bf16.msra.mxu0 %v1200
          %1213 = vmatprep.subr.bf16.mxu0 0
          %1214 = vmatpush1.bf16.msra.mxu0 %v1201
          %1215 = vmatprep.subr.bf16.mxu0 0
          %1216 = vmatpush1.bf16.msra.mxu0 %v1209
          %1217 = vmatprep.subr.bf16.mxu0 0
          %1218 = vmatpush1.bf16.msra.mxu0 0
          %1219 = vmatprep.subr.bf16.mxu0 0
          %1220 = vmatpush1.bf16.msra.mxu0 0
          %1221 = vmatprep.subr.bf16.mxu0 0
          %1222 = vmatpush1.bf16.msra.mxu0 0
          %1223 = vmatprep.subr.bf16.mxu0 0
          %1224 = vmatpush1.bf16.msra.mxu0 0
          %1225 = vmatprep.subr.bf16.mxu0 0
          %1226 = vmatpush1.bf16.msra.mxu0 0
          %1227 = vmatprep.subr.bf16.mxu0 0
          %1228 = vmatpush1.bf16.msra.mxu0 0
          %1229 = vmatprep.subr.bf16.mxu0 0
          %1230 = vmatpush1.bf16.msra.mxu0 0
          %1231 = vmatprep.subr.bf16.mxu0 0
          %1232 = vmatpush1.bf16.msra.mxu0 0
          %1233 = vmatprep.subr.bf16.mxu0 0
          %1234 = vmatpush1.bf16.msra.mxu0 0
          %1235 = vmatprep.subr.bf16.mxu0 0
          %1236 = vmatpush1.bf16.msra.mxu0 0
          %1237 = vmatprep.subr.bf16.mxu0 0
          %1238 = vmatpush1.bf16.msra.mxu0 0
          %1239 = vmatprep.subr.bf16.mxu0 0
          %1240 = vmatpush1.bf16.msra.mxu0 0
          %1241 = vmatprep.subr.bf16.mxu0 0
          %1242 = vmatpush1.bf16.msra.mxu0 0
          %1243 = vmatprep.mubr.bf16.mxu0 0
          %1244 = vmatmul.mubr.bf16.gmra.mrb[0].mxu0 %v1206
          %v1245 = vpop.f32.mrb[0].mxu0
          %v1246 = vadd.f32 0.0, %v1245
          %v1247 = vpop.f32.mrb[0].mxu0
          %v1248 = vpop.f32.mrb[0].mxu0
          %v1249 = vpop.f32.mrb[0].mxu0
          %1250 = vdwg.mxu0
          %v1251 = vadd.f32 %v1183, %v1246
          %v1252 = vrot.slane %v1048, 3
          %v1253 = vrot.slane %v1049, 2
          %v1254 = vsel %vm500, %v1253, %v1252
          %v1255 = vpack.c.b16 %v1254, %v1254
          %v1262 = vunpack.c.l.b16 %v473
          %v1263 = vunpack.c.l.b16 %v474
          %v1264 = vunpack.c.l.b16 %v475
          %v1265 = vunpack.c.l.b16 %v476
          %v1266 = vunpack.c.l.b16 %v477
          %v1267 = vunpack.c.l.b16 %v478
          %v1268 = vpack.c.b16 %v1263, %v1262
          %v1269 = vpack.c.b16 %v1265, %v1264
          %v1270 = vpack.c.b16 %v1267, %v1266
          %v1274 = vsel %vm520, %v1255, 0
          %v1277 = vsel %vm524, %v1270, 0
          %1279 = vmatprep.subr.bf16.mxu0 0
          %1280 = vmatpush1.bf16.msra.mxu0 %v1268
          %1281 = vmatprep.subr.bf16.mxu0 0
          %1282 = vmatpush1.bf16.msra.mxu0 %v1269
          %1283 = vmatprep.subr.bf16.mxu0 0
          %1284 = vmatpush1.bf16.msra.mxu0 %v1277
          %1285 = vmatprep.subr.bf16.mxu0 0
          %1286 = vmatpush1.bf16.msra.mxu0 0
          %1287 = vmatprep.subr.bf16.mxu0 0
          %1288 = vmatpush1.bf16.msra.mxu0 0
          %1289 = vmatprep.subr.bf16.mxu0 0
          %1290 = vmatpush1.bf16.msra.mxu0 0
          %1291 = vmatprep.subr.bf16.mxu0 0
          %1292 = vmatpush1.bf16.msra.mxu0 0
          %1293 = vmatprep.subr.bf16.mxu0 0
          %1294 = vmatpush1.bf16.msra.mxu0 0
          %1295 = vmatprep.subr.bf16.mxu0 0
          %1296 = vmatpush1.bf16.msra.mxu0 0
          %1297 = vmatprep.subr.bf16.mxu0 0
          %1298 = vmatpush1.bf16.msra.mxu0 0
          %1299 = vmatprep.subr.bf16.mxu0 0
          %1300 = vmatpush1.bf16.msra.mxu0 0
          %1301 = vmatprep.subr.bf16.mxu0 0
          %1302 = vmatpush1.bf16.msra.mxu0 0
          %1303 = vmatprep.subr.bf16.mxu0 0
          %1304 = vmatpush1.bf16.msra.mxu0 0
          %1305 = vmatprep.subr.bf16.mxu0 0
          %1306 = vmatpush1.bf16.msra.mxu0 0
          %1307 = vmatprep.subr.bf16.mxu0 0
          %1308 = vmatpush1.bf16.msra.mxu0 0
          %1309 = vmatprep.subr.bf16.mxu0 0
          %1310 = vmatpush1.bf16.msra.mxu0 0
          %1311 = vmatprep.mubr.bf16.mxu0 0
          %1312 = vmatmul.mubr.bf16.gmra.mrb[0].mxu0 %v1274
          %v1313 = vpop.f32.mrb[0].mxu0
          %v1314 = vadd.f32 0.0, %v1313
          %v1315 = vpop.f32.mrb[0].mxu0
          %v1316 = vpop.f32.mrb[0].mxu0
          %v1317 = vpop.f32.mrb[0].mxu0
          %1318 = vdwg.mxu0
          %v1319 = vadd.f32 %v1251, %v1314
          %v1320 = vrot.slane %v1048, 4
          %v1321 = vrot.slane %v1049, 3
          %v1322 = vsel %vm500, %v1321, %v1320
          %v1323 = vpack.c.b16 %v1322, %v1322
          %v1330 = vunpack.c.l.b16 %v479
          %v1331 = vunpack.c.l.b16 %v480
          %v1332 = vunpack.c.l.b16 %v481
          %v1333 = vunpack.c.l.b16 %v482
          %v1334 = vunpack.c.l.b16 %v483
          %v1335 = vunpack.c.l.b16 %v484
          %v1336 = vpack.c.b16 %v1331, %v1330
          %v1337 = vpack.c.b16 %v1333, %v1332
          %v1338 = vpack.c.b16 %v1335, %v1334
          %v1342 = vsel %vm520, %v1323, 0
          %v1345 = vsel %vm524, %v1338, 0
          %1347 = vmatprep.subr.bf16.mxu0 0
          %1348 = vmatpush1.bf16.msra.mxu0 %v1336
          %1349 = vmatprep.subr.bf16.mxu0 0
          %1350 = vmatpush1.bf16.msra.mxu0 %v1337
          %1351 = vmatprep.subr.bf16.mxu0 0
          %1352 = vmatpush1.bf16.msra.mxu0 %v1345
          %1353 = vmatprep.subr.bf16.mxu0 0
          %1354 = vmatpush1.bf16.msra.mxu0 0
          %1355 = vmatprep.subr.bf16.mxu0 0
          %1356 = vmatpush1.bf16.msra.mxu0 0
          %1357 = vmatprep.subr.bf16.mxu0 0
          %1358 = vmatpush1.bf16.msra.mxu0 0
          %1359 = vmatprep.subr.bf16.mxu0 0
          %1360 = vmatpush1.bf16.msra.mxu0 0
          %1361 = vmatprep.subr.bf16.mxu0 0
          %1362 = vmatpush1.bf16.msra.mxu0 0
          %1363 = vmatprep.subr.bf16.mxu0 0
          %1364 = vmatpush1.bf16.msra.mxu0 0
          %1365 = vmatprep.subr.bf16.mxu0 0
          %1366 = vmatpush1.bf16.msra.mxu0 0
          %1367 = vmatprep.subr.bf16.mxu0 0
          %1368 = vmatpush1.bf16.msra.mxu0 0
          %1369 = vmatprep.subr.bf16.mxu0 0
          %1370 = vmatpush1.bf16.msra.mxu0 0
          %1371 = vmatprep.subr.bf16.mxu0 0
          %1372 = vmatpush1.bf16.msra.mxu0 0
          %1373 = vmatprep.subr.bf16.mxu0 0
          %1374 = vmatpush1.bf16.msra.mxu0 0
          %1375 = vmatprep.subr.bf16.mxu0 0
          %1376 = vmatpush1.bf16.msra.mxu0 0
          %1377 = vmatprep.subr.bf16.mxu0 0
          %1378 = vmatpush1.bf16.msra.mxu0 0
          %1379 = vmatprep.mubr.bf16.mxu0 0
          %1380 = vmatmul.mubr.bf16.gmra.mrb[0].mxu0 %v1342
          %v1381 = vpop.f32.mrb[0].mxu0
          %v1382 = vadd.f32 0.0, %v1381
          %v1383 = vpop.f32.mrb[0].mxu0
          %v1384 = vpop.f32.mrb[0].mxu0
          %v1385 = vpop.f32.mrb[0].mxu0
          %1386 = vdwg.mxu0
          %v1387 = vadd.f32 %v1319, %v1382
          %v1388 = vrot.slane %v1048, 5
          %v1389 = vrot.slane %v1049, 4
          %v1390 = vsel %vm500, %v1389, %v1388
          %v1391 = vpack.c.b16 %v1390, %v1390
          %v1398 = vunpack.c.l.b16 %v485
          %v1399 = vunpack.c.l.b16 %v486
          %v1400 = vunpack.c.l.b16 %v487
          %v1401 = vunpack.c.l.b16 %v488
          %v1402 = vunpack.c.l.b16 %v489
          %v1403 = vunpack.c.l.b16 %v490
          %v1404 = vpack.c.b16 %v1399, %v1398
          %v1405 = vpack.c.b16 %v1401, %v1400
          %v1406 = vpack.c.b16 %v1403, %v1402
          %v1410 = vsel %vm520, %v1391, 0
          %v1413 = vsel %vm524, %v1406, 0
          %1415 = vmatprep.subr.bf16.mxu0 0
          %1416 = vmatpush1.bf16.msra.mxu0 %v1404
          %1417 = vmatprep.subr.bf16.mxu0 0
          %1418 = vmatpush1.bf16.msra.mxu0 %v1405
          %1419 = vmatprep.subr.bf16.mxu0 0
          %1420 = vmatpush1.bf16.msra.mxu0 %v1413
          %1421 = vmatprep.subr.bf16.mxu0 0
          %1422 = vmatpush1.bf16.msra.mxu0 0
          %1423 = vmatprep.subr.bf16.mxu0 0
          %1424 = vmatpush1.bf16.msra.mxu0 0
          %1425 = vmatprep.subr.bf16.mxu0 0
          %1426 = vmatpush1.bf16.msra.mxu0 0
          %1427 = vmatprep.subr.bf16.mxu0 0
          %1428 = vmatpush1.bf16.msra.mxu0 0
          %1429 = vmatprep.subr.bf16.mxu0 0
          %1430 = vmatpush1.bf16.msra.mxu0 0
          %1431 = vmatprep.subr.bf16.mxu0 0
          %1432 = vmatpush1.bf16.msra.mxu0 0
          %1433 = vmatprep.subr.bf16.mxu0 0
          %1434 = vmatpush1.bf16.msra.mxu0 0
          %1435 = vmatprep.subr.bf16.mxu0 0
          %1436 = vmatpush1.bf16.msra.mxu0 0
          %1437 = vmatprep.subr.bf16.mxu0 0
          %1438 = vmatpush1.bf16.msra.mxu0 0
          %1439 = vmatprep.subr.bf16.mxu0 0
          %1440 = vmatpush1.bf16.msra.mxu0 0
          %1441 = vmatprep.subr.bf16.mxu0 0
          %1442 = vmatpush1.bf16.msra.mxu0 0
          %1443 = vmatprep.subr.bf16.mxu0 0
          %1444 = vmatpush1.bf16.msra.mxu0 0
          %1445 = vmatprep.subr.bf16.mxu0 0
          %1446 = vmatpush1.bf16.msra.mxu0 0
          %1447 = vmatprep.mubr.bf16.mxu0 0
          %1448 = vmatmul.mubr.bf16.gmra.mrb[0].mxu0 %v1410
          %v1449 = vpop.f32.mrb[0].mxu0
          %v1450 = vadd.f32 0.0, %v1449
          %v1451 = vpop.f32.mrb[0].mxu0
          %v1452 = vpop.f32.mrb[0].mxu0
          %v1453 = vpop.f32.mrb[0].mxu0
          %1454 = vdwg.mxu0
          %v1455 = vadd.f32 %v1387, %v1450
          %v1456 = vld [vmem:[%s3] sm:$0xff]
          %v1457 = vld [vmem:[%s3 + $0x8] sm:$0xff]
          %v1458 = vld [vmem:[%s3 + $0x10] sm:$0xff]
          %v1459 = vld [vmem:[%s3 + $0x18] sm:$0xff]
          %v1460 = vld [vmem:[%s3 + $0x20] sm:$0xff]
          %v1461 = vld [vmem:[%s3 + $0x28] sm:$0xff]
          %v1462 = vld [vmem:[%s3 + $0x30] sm:$0xff]
          %v1463 = vld [vmem:[%s3 + $0x38] sm:$0xff]
          %v1464 = vld [vmem:[%s3 + $0x40] sm:$0xff]
          %v1465 = vld [vmem:[%s3 + $0x48] sm:$0xff]
          %v1466 = vld [vmem:[%s3 + $0x50] sm:$0xff]
          %v1467 = vld [vmem:[%s3 + $0x58] sm:$0xff]
          %v1468 = vld [vmem:[%s3 + $0x60] sm:$0xff]
          %v1469 = vld [vmem:[%s3 + $0x68] sm:$0xff]
          %v1470 = vld [vmem:[%s3 + $0x70] sm:$0xff]
          %v1471 = vld [vmem:[%s3 + $0x78] sm:$0xff]
          %v1472 = vld [vmem:[%s5] sm:$0xff]
          %v1473 = vld [vmem:[%s5 + $0x8] sm:$0xff]
          %v1474 = vld [vmem:[%s5 + $0x10] sm:$0xff]
          %v1475 = vld [vmem:[%s5 + $0x18] sm:$0xff]
          %vm1476 = vcmask 261120
          %v1478 = vsel %vm1476, %v1456, 0
          %v1481 = vsel %vm1476, %v1457, 0
          %v1484 = vsel %vm1476, %v1458, 0
          %v1487 = vsel %vm1476, %v1459, 0
          %v1490 = vsel %vm1476, %v1460, 0
          %v1493 = vsel %vm1476, %v1461, 0
          %v1496 = vsel %vm1476, %v1462, 0
          %v1499 = vsel %vm1476, %v1463, 0
          %v1502 = vsel %vm1476, %v1464, 0
          %v1505 = vsel %vm1476, %v1465, 0
          %v1508 = vsel %vm1476, %v1466, 0
          %v1511 = vsel %vm1476, %v1467, 0
          %v1514 = vsel %vm1476, %v1468, 0
          %v1517 = vsel %vm1476, %v1469, 0
          %v1520 = vsel %vm1476, %v1470, 0
          %v1523 = vsel %vm1476, %v1471, 0
          %1525 = vmatprep.subr.mxu0 0.0
          %1526 = vmatpush1.msra.mxu0 %v1472
          %1527 = vmatprep.subr.mxu0 0.0
          %1528 = vmatpush1.msra.mxu0 %v1473
          %1529 = vmatprep.subr.mxu0 0.0
          %1530 = vmatpush1.msra.mxu0 %v1474
          %1531 = vmatprep.subr.mxu0 0.0
          %1532 = vmatpush1.msra.mxu0 %v1475
          %1533 = vmatprep.subr.mxu0 0.0
          %1534 = vmatpush1.msra.mxu0 0.0
          %1535 = vmatprep.subr.mxu0 0.0
          %1536 = vmatpush1.msra.mxu0 0.0
          %1537 = vmatprep.subr.mxu0 0.0
          %1538 = vmatpush1.msra.mxu0 0.0
          %1539 = vmatprep.subr.mxu0 0.0
          %1540 = vmatpush1.msra.mxu0 0.0
          %1541 = vmatprep.subr.mxu0 0.0
          %1542 = vmatpush1.msra.mxu0 0.0
          %1543 = vmatprep.subr.mxu0 0.0
          %1544 = vmatpush1.msra.mxu0 0.0
          %1545 = vmatprep.subr.mxu0 0.0
          %1546 = vmatpush1.msra.mxu0 0.0
          %1547 = vmatprep.subr.mxu0 0.0
          %1548 = vmatpush1.msra.mxu0 0.0
          %1549 = vmatprep.subr.mxu0 0.0
          %1550 = vmatpush1.msra.mxu0 0.0
          %1551 = vmatprep.subr.mxu0 0.0
          %1552 = vmatpush1.msra.mxu0 0.0
          %1553 = vmatprep.subr.mxu0 0.0
          %1554 = vmatpush1.msra.mxu0 0.0
          %1555 = vmatprep.subr.mxu0 0.0
          %1556 = vmatpush1.msra.mxu0 0.0
          %1557 = vmatprep.subr.mxu0 0.0
          %1558 = vmatpush1.msra.mxu0 0.0
          %1559 = vmatprep.subr.mxu0 0.0
          %1560 = vmatpush1.msra.mxu0 0.0
          %1561 = vmatprep.subr.mxu0 0.0
          %1562 = vmatpush1.msra.mxu0 0.0
          %1563 = vmatprep.subr.mxu0 0.0
          %1564 = vmatpush1.msra.mxu0 0.0
          %1565 = vmatprep.subr.mxu0 0.0
          %1566 = vmatpush1.msra.mxu0 0.0
          %1567 = vmatprep.subr.mxu0 0.0
          %1568 = vmatpush1.msra.mxu0 0.0
          %1569 = vmatprep.subr.mxu0 0.0
          %1570 = vmatpush1.msra.mxu0 0.0
          %1571 = vmatprep.subr.mxu0 0.0
          %1572 = vmatpush1.msra.mxu0 0.0
          %1573 = vmatprep.subr.mxu0 0.0
          %1574 = vmatpush1.msra.mxu0 0.0
          %1575 = vmatprep.subr.mxu0 0.0
          %1576 = vmatpush1.msra.mxu0 0.0
          %1577 = vmatprep.subr.mxu0 0.0
          %1578 = vmatpush1.msra.mxu0 0.0
          %1579 = vmatprep.subr.mxu0 0.0
          %1580 = vmatpush1.msra.mxu0 0.0
          %1581 = vmatprep.subr.mxu0 0.0
          %1582 = vmatpush1.msra.mxu0 0.0
          %1583 = vmatprep.subr.mxu0 0.0
          %1584 = vmatpush1.msra.mxu0 0.0
          %1585 = vmatprep.subr.mxu0 0.0
          %1586 = vmatpush1.msra.mxu0 0.0
          %1587 = vmatprep.subr.mxu0 0.0
          %1588 = vmatpush1.msra.mxu0 0.0
          %1589 = vmatprep.mubr.f32.mxu0 0.0
          %1590 = vmatmul.mubr.f32.gmra.mrb[0].mxu0 %v1478
          %v1591 = vpop.f32.mrb[0].mxu0
          %v1592 = vadd.f32 0.0, %v1591
          %v1593 = vpop.f32.mrb[0].mxu0
          %1594 = vmatprep.mubr.f32.mxu0 0.0
          %1595 = vmatmul.mubr.f32.gmra.mrb[0].mxu0 %v1481
          %v1596 = vpop.f32.mrb[0].mxu0
          %v1597 = vadd.f32 0.0, %v1596
          %v1598 = vpop.f32.mrb[0].mxu0
          %1599 = vmatprep.mubr.f32.mxu0 0.0
          %1600 = vmatmul.mubr.f32.gmra.mrb[0].mxu0 %v1484
          %v1601 = vpop.f32.mrb[0].mxu0
          %v1602 = vadd.f32 0.0, %v1601
          %v1603 = vpop.f32.mrb[0].mxu0
          %1604 = vmatprep.mubr.f32.mxu0 0.0
          %1605 = vmatmul.mubr.f32.gmra.mrb[0].mxu0 %v1487
          %v1606 = vpop.f32.mrb[0].mxu0
          %v1607 = vadd.f32 0.0, %v1606
          %v1608 = vpop.f32.mrb[0].mxu0
          %1609 = vmatprep.mubr.f32.mxu0 0.0
          %1610 = vmatmul.mubr.f32.gmra.mrb[0].mxu0 %v1490
          %v1611 = vpop.f32.mrb[0].mxu0
          %v1612 = vadd.f32 0.0, %v1611
          %v1613 = vpop.f32.mrb[0].mxu0
          %1614 = vmatprep.mubr.f32.mxu0 0.0
          %1615 = vmatmul.mubr.f32.gmra.mrb[0].mxu0 %v1493
          %v1616 = vpop.f32.mrb[0].mxu0
          %v1617 = vadd.f32 0.0, %v1616
          %v1618 = vpop.f32.mrb[0].mxu0
          %1619 = vmatprep.mubr.f32.mxu0 0.0
          %1620 = vmatmul.mubr.f32.gmra.mrb[0].mxu0 %v1496
          %v1621 = vpop.f32.mrb[0].mxu0
          %v1622 = vadd.f32 0.0, %v1621
          %v1623 = vpop.f32.mrb[0].mxu0
          %1624 = vmatprep.mubr.f32.mxu0 0.0
          %1625 = vmatmul.mubr.f32.gmra.mrb[0].mxu0 %v1499
          %v1626 = vpop.f32.mrb[0].mxu0
          %v1627 = vadd.f32 0.0, %v1626
          %v1628 = vpop.f32.mrb[0].mxu0
          %1629 = vmatprep.mubr.f32.mxu0 0.0
          %1630 = vmatmul.mubr.f32.gmra.mrb[0].mxu0 %v1502
          %v1631 = vpop.f32.mrb[0].mxu0
          %v1632 = vadd.f32 0.0, %v1631
          %v1633 = vpop.f32.mrb[0].mxu0
          %1634 = vmatprep.mubr.f32.mxu0 0.0
          %1635 = vmatmul.mubr.f32.gmra.mrb[0].mxu0 %v1505
          %v1636 = vpop.f32.mrb[0].mxu0
          %v1637 = vadd.f32 0.0, %v1636
          %v1638 = vpop.f32.mrb[0].mxu0
          %1639 = vmatprep.mubr.f32.mxu0 0.0
          %1640 = vmatmul.mubr.f32.gmra.mrb[0].mxu0 %v1508
          %v1641 = vpop.f32.mrb[0].mxu0
          %v1642 = vadd.f32 0.0, %v1641
          %v1643 = vpop.f32.mrb[0].mxu0
          %1644 = vmatprep.mubr.f32.mxu0 0.0
          %1645 = vmatmul.mubr.f32.gmra.mrb[0].mxu0 %v1511
          %v1646 = vpop.f32.mrb[0].mxu0
          %v1647 = vadd.f32 0.0, %v1646
          %v1648 = vpop.f32.mrb[0].mxu0
          %1649 = vmatprep.mubr.f32.mxu0 0.0
          %1650 = vmatmul.mubr.f32.gmra.mrb[0].mxu0 %v1514
          %v1651 = vpop.f32.mrb[0].mxu0
          %v1652 = vadd.f32 0.0, %v1651
          %v1653 = vpop.f32.mrb[0].mxu0
          %1654 = vmatprep.mubr.f32.mxu0 0.0
          %1655 = vmatmul.mubr.f32.gmra.mrb[0].mxu0 %v1517
          %v1656 = vpop.f32.mrb[0].mxu0
          %v1657 = vadd.f32 0.0, %v1656
          %v1658 = vpop.f32.mrb[0].mxu0
          %1659 = vmatprep.mubr.f32.mxu0 0.0
          %1660 = vmatmul.mubr.f32.gmra.mrb[0].mxu0 %v1520
          %v1661 = vpop.f32.mrb[0].mxu0
          %v1662 = vadd.f32 0.0, %v1661
          %v1663 = vpop.f32.mrb[0].mxu0
          %1664 = vmatprep.mubr.f32.mxu0 0.0
          %1665 = vmatmul.mubr.f32.gmra.mrb[0].mxu0 %v1523
          %v1666 = vpop.f32.mrb[0].mxu0
          %v1667 = vadd.f32 0.0, %v1666
          %v1668 = vpop.f32.mrb[0].mxu0
          %1669 = vdwg.mxu0
          %v1670 = vmul.f32 %v1455, %v1455
          %vm1671 = vcmask 1041408
          %v1672 = vsel %vm1671, %v1670, 0.0
          %1673 = vadd.xlane.f32.xlu0 %v1672
          %v1674 = vpop.xlane.xlu0 %1673
          %v1675 = vadd.f32 %v1674, 1e-12
          %v1676 = vrsqrt.pop %v1675
          %v1677 = vmul.f32 %v1455, %v1676
          %v1678 = vmul.f32 %v1592, %v1592
          %v1679 = vmul.f32 %v1597, %v1597
          %v1680 = vmul.f32 %v1602, %v1602
          %v1681 = vmul.f32 %v1607, %v1607
          %v1682 = vmul.f32 %v1612, %v1612
          %v1683 = vmul.f32 %v1617, %v1617
          %v1684 = vmul.f32 %v1622, %v1622
          %v1685 = vmul.f32 %v1627, %v1627
          %v1686 = vmul.f32 %v1632, %v1632
          %v1687 = vmul.f32 %v1637, %v1637
          %v1688 = vmul.f32 %v1642, %v1642
          %v1689 = vmul.f32 %v1647, %v1647
          %v1690 = vmul.f32 %v1652, %v1652
          %v1691 = vmul.f32 %v1657, %v1657
          %v1692 = vmul.f32 %v1662, %v1662
          %v1693 = vmul.f32 %v1667, %v1667
          %1694 = vadd.xlane.f32.xlu0 %v1678
          %v1695 = vpop.xlane.xlu0 %1694
          %1696 = vadd.xlane.f32.xlu0 %v1679
          %v1697 = vpop.xlane.xlu0 %1696
          %1698 = vadd.xlane.f32.xlu0 %v1680
          %v1699 = vpop.xlane.xlu0 %1698
          %1700 = vadd.xlane.f32.xlu0 %v1681
          %v1701 = vpop.xlane.xlu0 %1700
          %1702 = vadd.xlane.f32.xlu0 %v1682
          %v1703 = vpop.xlane.xlu0 %1702
          %1704 = vadd.xlane.f32.xlu0 %v1683
          %v1705 = vpop.xlane.xlu0 %1704
          %1706 = vadd.xlane.f32.xlu0 %v1684
          %v1707 = vpop.xlane.xlu0 %1706
          %1708 = vadd.xlane.f32.xlu0 %v1685
          %v1709 = vpop.xlane.xlu0 %1708
          %1710 = vadd.xlane.f32.xlu0 %v1686
          %v1711 = vpop.xlane.xlu0 %1710
          %1712 = vadd.xlane.f32.xlu0 %v1687
          %v1713 = vpop.xlane.xlu0 %1712
          %1714 = vadd.xlane.f32.xlu0 %v1688
          %v1715 = vpop.xlane.xlu0 %1714
          %1716 = vadd.xlane.f32.xlu0 %v1689
          %v1717 = vpop.xlane.xlu0 %1716
          %1718 = vadd.xlane.f32.xlu0 %v1690
          %v1719 = vpop.xlane.xlu0 %1718
          %1720 = vadd.xlane.f32.xlu0 %v1691
          %v1721 = vpop.xlane.xlu0 %1720
          %1722 = vadd.xlane.f32.xlu0 %v1692
          %v1723 = vpop.xlane.xlu0 %1722
          %1724 = vadd.xlane.f32.xlu0 %v1693
          %v1725 = vpop.xlane.xlu0 %1724
          %v1726 = vadd.f32 %v1695, 1e-12
          %v1727 = vadd.f32 %v1697, 1e-12
          %v1728 = vadd.f32 %v1699, 1e-12
          %v1729 = vadd.f32 %v1701, 1e-12
          %v1730 = vadd.f32 %v1703, 1e-12
          %v1731 = vadd.f32 %v1705, 1e-12
          %v1732 = vadd.f32 %v1707, 1e-12
          %v1733 = vadd.f32 %v1709, 1e-12
          %v1734 = vadd.f32 %v1711, 1e-12
          %v1735 = vadd.f32 %v1713, 1e-12
          %v1736 = vadd.f32 %v1715, 1e-12
          %v1737 = vadd.f32 %v1717, 1e-12
          %v1738 = vadd.f32 %v1719, 1e-12
          %v1739 = vadd.f32 %v1721, 1e-12
          %v1740 = vadd.f32 %v1723, 1e-12
          %v1741 = vadd.f32 %v1725, 1e-12
          %v1742 = vrsqrt.pop %v1726
          %v1743 = vrsqrt.pop %v1727
          %v1744 = vrsqrt.pop %v1728
          %v1745 = vrsqrt.pop %v1729
          %v1746 = vrsqrt.pop %v1730
          %v1747 = vrsqrt.pop %v1731
          %v1748 = vrsqrt.pop %v1732
          %v1749 = vrsqrt.pop %v1733
          %v1750 = vrsqrt.pop %v1734
          %v1751 = vrsqrt.pop %v1735
          %v1752 = vrsqrt.pop %v1736
          %v1753 = vrsqrt.pop %v1737
          %v1754 = vrsqrt.pop %v1738
          %v1755 = vrsqrt.pop %v1739
          %v1756 = vrsqrt.pop %v1740
          %v1757 = vrsqrt.pop %v1741
          %v1758 = vmul.f32 %v1592, %v1742
          %v1759 = vmul.f32 %v1597, %v1743
          %v1760 = vmul.f32 %v1602, %v1744
          %v1761 = vmul.f32 %v1607, %v1745
          %v1762 = vmul.f32 %v1612, %v1746
          %v1763 = vmul.f32 %v1617, %v1747
          %v1764 = vmul.f32 %v1622, %v1748
          %v1765 = vmul.f32 %v1627, %v1749
          %v1766 = vmul.f32 %v1632, %v1750
          %v1767 = vmul.f32 %v1637, %v1751
          %v1768 = vmul.f32 %v1642, %v1752
          %v1769 = vmul.f32 %v1647, %v1753
          %v1770 = vmul.f32 %v1652, %v1754
          %v1771 = vmul.f32 %v1657, %v1755
          %v1772 = vmul.f32 %v1662, %v1756
          %v1773 = vmul.f32 %v1667, %v1757
          %1774 = vmatprep.subr.mxu0 0.0
          %1775 = vmatpush1.xpose.msra.mxu0 %v1758
          %1776 = vmatprep.subr.mxu0 0.0
          %1777 = vmatpush1.xpose.msra.mxu0 %v1759
          %1778 = vmatprep.subr.mxu0 0.0
          %1779 = vmatpush1.xpose.msra.mxu0 %v1760
          %1780 = vmatprep.subr.mxu0 0.0
          %1781 = vmatpush1.xpose.msra.mxu0 %v1761
          %1782 = vmatprep.subr.mxu0 0.0
          %1783 = vmatpush1.xpose.msra.mxu0 %v1762
          %1784 = vmatprep.subr.mxu0 0.0
          %1785 = vmatpush1.xpose.msra.mxu0 %v1763
          %1786 = vmatprep.subr.mxu0 0.0
          %1787 = vmatpush1.xpose.msra.mxu0 %v1764
          %1788 = vmatprep.subr.mxu0 0.0
          %1789 = vmatpush1.xpose.msra.mxu0 %v1765
          %1790 = vmatprep.subr.mxu0 0.0
          %1791 = vmatpush1.xpose.msra.mxu0 %v1766
          %1792 = vmatprep.subr.mxu0 0.0
          %1793 = vmatpush1.xpose.msra.mxu0 %v1767
          %1794 = vmatprep.subr.mxu0 0.0
          %1795 = vmatpush1.xpose.msra.mxu0 %v1768
          %1796 = vmatprep.subr.mxu0 0.0
          %1797 = vmatpush1.xpose.msra.mxu0 %v1769
          %1798 = vmatprep.subr.mxu0 0.0
          %1799 = vmatpush1.xpose.msra.mxu0 %v1770
          %1800 = vmatprep.subr.mxu0 0.0
          %1801 = vmatpush1.xpose.msra.mxu0 %v1771
          %1802 = vmatprep.subr.mxu0 0.0
          %1803 = vmatpush1.xpose.msra.mxu0 %v1772
          %1804 = vmatprep.subr.mxu0 0.0
          %1805 = vmatpush1.xpose.msra.mxu0 %v1773
          %1806 = vmatprep.subr.mxu0 0.0
          %1807 = vmatpush1.xpose.msra.mxu0 0.0
          %1808 = vmatprep.subr.mxu0 0.0
          %1809 = vmatpush1.xpose.msra.mxu0 0.0
          %1810 = vmatprep.subr.mxu0 0.0
          %1811 = vmatpush1.xpose.msra.mxu0 0.0
          %1812 = vmatprep.subr.mxu0 0.0
          %1813 = vmatpush1.xpose.msra.mxu0 0.0
          %1814 = vmatprep.subr.mxu0 0.0
          %1815 = vmatpush1.xpose.msra.mxu0 0.0
          %1816 = vmatprep.subr.mxu0 0.0
          %1817 = vmatpush1.xpose.msra.mxu0 0.0
          %1818 = vmatprep.subr.mxu0 0.0
          %1819 = vmatpush1.xpose.msra.mxu0 0.0
          %1820 = vmatprep.subr.mxu0 0.0
          %1821 = vmatpush1.xpose.msra.mxu0 0.0
          %1822 = vmatprep.subr.mxu0 0.0
          %1823 = vmatpush1.xpose.msra.mxu0 0.0
          %1824 = vmatprep.subr.mxu0 0.0
          %1825 = vmatpush1.xpose.msra.mxu0 0.0
          %1826 = vmatprep.subr.mxu0 0.0
          %1827 = vmatpush1.xpose.msra.mxu0 0.0
          %1828 = vmatprep.subr.mxu0 0.0
          %1829 = vmatpush1.xpose.msra.mxu0 0.0
          %1830 = vmatprep.subr.mxu0 0.0
          %1831 = vmatpush1.xpose.msra.mxu0 0.0
          %1832 = vmatprep.subr.mxu0 0.0
          %1833 = vmatpush1.xpose.msra.mxu0 0.0
          %1834 = vmatprep.subr.mxu0 0.0
          %1835 = vmatpush1.xpose.msra.mxu0 0.0
          %1836 = vmatprep.subr.mxu0 0.0
          %1837 = vmatpush1.xpose.msra.mxu0 0.0
          %1838 = vmatprep.mubr.f32.mxu0 0.0
          %1839 = vmatmul.mubr.f32.gmra.mrb[0].mxu0 %v1677
          %v1840 = vpop.f32.mrb[0].mxu0
          %v1841 = vadd.f32 0.0, %v1840
          %v1842 = vpop.f32.mrb[0].mxu0
          %1843 = vdwg.mxu0
          %v1844 = vsub.f32 1.0, %v1841
          %1845 = vst [vmem:[#allocation6] sm:$0x3] %v1844
        $region52: #{tpu_custom_call.1} parent=43 // pred_fallthru
          _
        // Predicated region
        $region53: #{tpu_custom_call.1} parent=43 // pred_check
          %p1846 = pneg %p163
        $region54: #{tpu_custom_call.1} parent=43 // pred_check_branch
          %1848 = sbr.rel (%p1846) target = $region56
        $region55: #{tpu_custom_call.1} parent=43 // pred_region
          %s1850 = ssub.s32 32, 32
          %1851 = vsyncadd [#allocation5], %s1850
          %s1853 = sshll.u32 [#allocation6], 4
          %s1854 = int_to_ptr.vmem [resolvable:$true] %s1853
          %1856 = dma.vmem_to_hbm [thread:$0]  %s1854, 32, %s6, [#allocation5]
        $region56: #{tpu_custom_call.1} parent=43 // pred_fallthru
          _
        // Predicated region
        $region57: #{tpu_custom_call.1} parent=43 // pred_check
          %p1857 = pneg %p163
        $region58: #{tpu_custom_call.1} parent=43 // pred_check_branch
          %1859 = sbr.rel (%p1857) target = $region60
        $region59: #{tpu_custom_call.1} parent=43 // pred_region
          %1860 = dma.done [#allocation5], 32
        $region60: #{tpu_custom_call.1} parent=43 // pred_fallthru
          _
      $region44: #{tpu_custom_call.1} parent=5 // pred_fallthru
        _
      %p1861 = scmp.le.s32.totalorder 2, %s14
      // Predicated region
      $region61: #{tpu_custom_call.1} parent=5 // pred_check
        %p1862 = pneg %p1861
      $region62: #{tpu_custom_call.1} parent=5 // pred_check_branch
        %1864 = sbr.rel (%p1862) target = $region64
      $region63: #{tpu_custom_call.1} parent=5 // pred_region
        %s1865 = ssub.s32 %s14, 2
      $region64: #{tpu_custom_call.1} parent=5 // pred_fallthru
        _
    $region6: #{tpu_custom_call.1} parent=1 // loop_footer
      %s18 = sadd.s32 1, %s14
    $region7: #{tpu_custom_call.1} parent=1 // loop_footer_branch
      %13 = sbr.rel target = $region3
    $region8: #{tpu_custom_call.1} parent=1 // loop_exit
      _
    %1866 = vsyncpa [#allocation4], 1
    %s1867 = scalar_lea.sflag [#allocation4], 1
    %1868 = vsyncpa %s1867, 1
    %1869 = vsyncpa [#allocation5], 1
    %s1870 = scalar_lea.sflag [#allocation5], 1
    %1871 = vsyncpa %s1870, 1

</llo_original>
